<compile_context>
chip_gen: v5e
topology: v5e:2x2
jax: 0.10.0
libtpu: 0.0.40
codegen_flags: <defaults>
</compile_context>

<pallas_src>
import functools
import math

import jax
import jax.numpy as jnp
from jax import lax
from jax.experimental import pallas as pl
from jax.experimental.pallas import tpu as pltpu


# ----------------------------- elementwise helpers ---------------------------

def _erf_approx(x):
    # Abramowitz & Stegun 7.1.26 (max abs err ~1.5e-7); pure VPU/EUP ops so it
    # is guaranteed to lower inside Mosaic (avoids relying on lax.erf lowering).
    a1, a2, a3, a4, a5 = (0.254829592, -0.284496736, 1.421413741,
                          -1.453152027, 1.061405429)
    p = 0.3275911
    ax = jnp.abs(x)
    t = 1.0 / (1.0 + p * ax)
    poly = ((((a5 * t + a4) * t + a3) * t + a2) * t + a1) * t
    y = 1.0 - poly * jnp.exp(-ax * ax)
    return jnp.where(x >= 0.0, y, -y)


def _gelu_exact(y):
    # BERT uses exact (erf) GELU; computed here with a near-exact polynomial erf.
    return 0.5 * y * (1.0 + _erf_approx(y * (1.0 / math.sqrt(2.0))))


def _layernorm(x, g, b, eps):
    # Two independent reductions (sum, sum of squares) instead of the serial
    # mean -> centered-square -> mean chain; they can overlap on the XLUs.
    inv_n = 1.0 / x.shape[-1]
    s1 = jnp.sum(x, axis=-1, keepdims=True)
    s2 = jnp.sum(x * x, axis=-1, keepdims=True)
    mu = s1 * inv_n
    var = s2 * inv_n - mu * mu
    return (x - mu) * lax.rsqrt(var + eps) * g + b


# ----------------------------- fused encoder kernel --------------------------

def _bert_encoder_kernel(x_ref, mask_ref, emb_g_ref, emb_b_ref,
                         wqkv_ref, bqkv_ref, wo_ref, bo_ref,
                         ln1g_ref, ln1b_ref,
                         w1_ref, b1_ref, w2_ref, b2_ref,
                         ln2g_ref, ln2b_ref,
                         o_ref, *, num_layers, num_heads, batch, seq, hidden, eps):
    dh = hidden // num_heads
    scale = 1.0 / math.sqrt(dh)
    rows = batch * seq
    bf16 = jnp.bfloat16

    # Additive attention mask, broadcast ONCE (JAX does not CSE broadcast_in_dim).
    mask_bc = jnp.broadcast_to(mask_ref[...], (batch, seq, seq))   # (B, S, S) fp32

    # Embedding LayerNorm (embedding gathers already done in the JAX wrapper).
    x = _layernorm(x_ref[...], emb_g_ref[...], emb_b_ref[...], eps)   # (B*S, H) fp32

    # Whole encoder unrolled inside one kernel launch (weights stay in VMEM).
    for layer in range(num_layers):
        # ---- fused QKV projection: one (B*S, H) @ (H, 3H) bf16 matmul ----
        qkv = jnp.dot(x.astype(bf16), wqkv_ref[layer],
                      preferred_element_type=jnp.float32) + bqkv_ref[layer]
        # Fold the 1/sqrt(dh) scale into q once per layer (not per head).
        q = (qkv[:, 0 * hidden:1 * hidden] * scale).reshape(batch, seq, hidden)
        k = qkv[:, 1 * hidden:2 * hidden].reshape(batch, seq, hidden)
        v = qkv[:, 2 * hidden:3 * hidden].reshape(batch, seq, hidden)

        # ---- attention: loop only over heads; every step is batched over the
        #      whole batch (one wide softmax per head).  The output projection
        #      wo is fused per head into an fp32 accumulator, so nothing is
        #      concatenated or materialized as a full ctx tensor. ----
        attn_out = jnp.broadcast_to(bo_ref[layer], (rows, hidden))    # fp32
        for h in range(num_heads):
            cols = slice(h * dh, (h + 1) * dh)
            qh = q[:, :, cols].astype(bf16)                           # (B, S, dh)
            kh = k[:, :, cols].astype(bf16)
            vh = v[:, :, cols].astype(bf16)

            s = jnp.einsum('bqd,bkd->bqk', qh, kh,
                           preferred_element_type=jnp.float32)        # (B, S, S)
            s = s + mask_bc
            s = s - jnp.max(s, axis=-1, keepdims=True)
            p = jnp.exp(s)
            # divide -> EUP reciprocal (frees VALU slots)
            p = p * pl.reciprocal(jnp.sum(p, axis=-1, keepdims=True), approx=True)

            ctx = jnp.einsum('bqk,bkd->bqd', p.astype(bf16), vh,
                             preferred_element_type=jnp.float32)      # (B, S, dh)
            attn_out = attn_out + jnp.dot(
                ctx.reshape(rows, dh).astype(bf16),
                wo_ref[layer, cols, :],                                # (dh, H)
                preferred_element_type=jnp.float32)

        # ---- residual + LayerNorm ----
        x = _layernorm(attn_out + x, ln1g_ref[layer], ln1b_ref[layer], eps)

        # ---- FFN (exact GELU) + residual + LayerNorm ----
        h1 = jnp.dot(x.astype(bf16), w1_ref[layer],
                     preferred_element_type=jnp.float32) + b1_ref[layer]
        h1 = _gelu_exact(h1)
        ffn = jnp.dot(h1.astype(bf16), w2_ref[layer],
                      preferred_element_type=jnp.float32) + b2_ref[layer]
        x = _layernorm(ffn + x, ln2g_ref[layer], ln2b_ref[layer], eps)

    # Emit only the [CLS] rows (rows 0, S, 2S, ...): avoids storing the full
    # (B*S, H) hidden state to HBM and the post-kernel slice op.
    for b in range(batch):
        o_ref[b:b + 1, :] = x[b * seq:b * seq + 1, :].astype(o_ref.dtype)


def _full_spec(shape):
    nd = len(shape)
    return pl.BlockSpec(shape, lambda i, _nd=nd: (0,) * _nd)


# ----------------------------- params + wrapper -------------------------------

def init_params(key, *, vocab=128, hidden=32, num_heads=2, intermediate=64,
                num_layers=2, max_pos=16, type_vocab=2):
    keys = iter(jax.random.split(key, 3 + 6 * num_layers))

    def w(shape):
        return 0.02 * jax.random.normal(next(keys), shape, dtype=jnp.float32)

    wqkv, wo, w1, w2 = [], [], [], []
    for _ in range(num_layers):
        wq, wk, wv = w((hidden, hidden)), w((hidden, hidden)), w((hidden, hidden))
        wqkv.append(jnp.concatenate([wq, wk, wv], axis=1))   # fused (H, 3H)
        wo.append(w((hidden, hidden)))
        w1.append(w((hidden, intermediate)))
        w2.append(w((intermediate, hidden)))

    L, H, I = num_layers, hidden, intermediate
    bf = jnp.bfloat16
    return {
        "num_heads": num_heads,
        "word_emb": w((vocab, hidden)),
        "pos_emb": w((max_pos, hidden)),
        "type_emb": w((type_vocab, hidden)),
        "emb_ln_g": jnp.ones((1, H), jnp.float32),
        "emb_ln_b": jnp.zeros((1, H), jnp.float32),
        # Matmul weights stored bf16 (MXU-native, halves VMEM); biases/LN fp32.
        "wqkv": jnp.stack(wqkv).astype(bf),
        "bqkv": jnp.zeros((L, 1, 3 * H), jnp.float32),
        "wo": jnp.stack(wo).astype(bf),
        "bo": jnp.zeros((L, 1, H), jnp.float32),
        "ln1_g": jnp.ones((L, 1, H), jnp.float32),
        "ln1_b": jnp.zeros((L, 1, H), jnp.float32),
        "w1": jnp.stack(w1).astype(bf),
        "b1": jnp.zeros((L, 1, I), jnp.float32),
        "w2": jnp.stack(w2).astype(bf),
        "b2": jnp.zeros((L, 1, H), jnp.float32),
        "ln2_g": jnp.ones((L, 1, H), jnp.float32),
        "ln2_b": jnp.zeros((L, 1, H), jnp.float32),
    }


def bert_text_net(params, tokens, segments, input_masks):
    """Equivalent of BertTextNet.forward: BERT encoder -> last_hidden[:, 0, :]."""
    B, S = tokens.shape
    H = params["word_emb"].shape[1]
    nH = params["num_heads"]
    L = params["wqkv"].shape[0]

    # Embedding gathers are glue (stay in JAX); everything after runs in one kernel.
    emb = (params["word_emb"][tokens]
           + params["pos_emb"][jnp.arange(S)][None, :, :]
           + params["type_emb"][segments]).astype(jnp.float32)    # (B, S, H)
    x = emb.reshape(B * S, H)

    # Extended additive attention mask: 0 for keep, -10000 for pad.
    add_mask = ((1.0 - input_masks.astype(jnp.float32)) * -10000.0).reshape(B, 1, S)

    inputs = (x, add_mask,
              params["emb_ln_g"], params["emb_ln_b"],
              params["wqkv"], params["bqkv"], params["wo"], params["bo"],
              params["ln1_g"], params["ln1_b"],
              params["w1"], params["b1"], params["w2"], params["b2"],
              params["ln2_g"], params["ln2_b"])

    kernel = functools.partial(_bert_encoder_kernel,
                               num_layers=L, num_heads=nH,
                               batch=B, seq=S, hidden=H, eps=1e-12)

    text_embeddings = pl.pallas_call(
        kernel,
        out_shape=jax.ShapeDtypeStruct((B, H), jnp.float32),      # only [CLS] rows
        grid=(1,),
        in_specs=[_full_spec(a.shape) for a in inputs],
        out_specs=_full_spec((B, H)),
        compiler_params=pltpu.CompilerParams(
            dimension_semantics=("arbitrary",)),
    )(*inputs)

    return text_embeddings                                        # (B, H)


# ----------------------------- main -------------------------------------------

if __name__ == "__main__":
    B, S = 2, 8
    VOCAB, HIDDEN, HEADS, INTER, LAYERS, MAX_POS, TYPES = 128, 32, 2, 64, 2, 16, 2

    key = jax.random.PRNGKey(0)
    kp, kt = jax.random.split(key)
    params = init_params(kp, vocab=VOCAB, hidden=HIDDEN, num_heads=HEADS,
                         intermediate=INTER, num_layers=LAYERS,
                         max_pos=MAX_POS, type_vocab=TYPES)

    tokens = jax.random.randint(kt, (B, S), 0, VOCAB, dtype=jnp.int32)
    segments = jnp.zeros((B, S), dtype=jnp.int32)
    # Second sequence has 2 padding positions to exercise the attention mask.
    input_masks = jnp.array([[1] * S, [1] * (S - 2) + [0, 0]], dtype=jnp.int32)

    fwd = jax.jit(lambda t, s, m: bert_text_net(params, t, s, m))
    out = jax.block_until_ready(fwd(tokens, segments, input_masks))
    assert out.shape == (B, HIDDEN) and out.dtype == jnp.float32
    assert bool(jnp.all(jnp.isfinite(out)))
    print("KERNEL_OK")
</pallas_src>

<mosaic_0001>
module attributes {stable_mosaic.version = 11 : i64} {
  func.func @_bert_encoder_kernel(%arg0: i32, %arg1: memref<16x32xf32, #tpu.memory_space<vmem>>, %arg2: memref<2x1x8xf32, #tpu.memory_space<vmem>>, %arg3: memref<1x32xf32, #tpu.memory_space<vmem>>, %arg4: memref<1x32xf32, #tpu.memory_space<vmem>>, %arg5: memref<2x32x96xbf16, #tpu.memory_space<vmem>>, %arg6: memref<2x1x96xf32, #tpu.memory_space<vmem>>, %arg7: memref<2x32x32xbf16, #tpu.memory_space<vmem>>, %arg8: memref<2x1x32xf32, #tpu.memory_space<vmem>>, %arg9: memref<2x1x32xf32, #tpu.memory_space<vmem>>, %arg10: memref<2x1x32xf32, #tpu.memory_space<vmem>>, %arg11: memref<2x32x64xbf16, #tpu.memory_space<vmem>>, %arg12: memref<2x1x64xf32, #tpu.memory_space<vmem>>, %arg13: memref<2x64x32xbf16, #tpu.memory_space<vmem>>, %arg14: memref<2x1x32xf32, #tpu.memory_space<vmem>>, %arg15: memref<2x1x32xf32, #tpu.memory_space<vmem>>, %arg16: memref<2x1x32xf32, #tpu.memory_space<vmem>>, %arg17: memref<2x32xf32, #tpu.memory_space<vmem>>) attributes {dimension_semantics = [#tpu.dimension_semantics<arbitrary>], iteration_bounds = array<i64: 1>, scalar_prefetch = 0 : i64, scratch_operands = 0 : i64, tpu.core_type = #tpu.core_type<tc>, window_params = [{pipeline_mode = #tpu.pipeline_mode<synchronous>, transform_indices = @transform_0, window_bounds = array<i64: 16, 32>}, {pipeline_mode = #tpu.pipeline_mode<synchronous>, transform_indices = @transform_1, window_bounds = array<i64: 2, 1, 8>}, {pipeline_mode = #tpu.pipeline_mode<synchronous>, transform_indices = @transform_2, window_bounds = array<i64: 1, 32>}, {pipeline_mode = #tpu.pipeline_mode<synchronous>, transform_indices = @transform_3, window_bounds = array<i64: 1, 32>}, {pipeline_mode = #tpu.pipeline_mode<synchronous>, transform_indices = @transform_4, window_bounds = array<i64: 2, 32, 96>}, {pipeline_mode = #tpu.pipeline_mode<synchronous>, transform_indices = @transform_5, window_bounds = array<i64: 2, 1, 96>}, {pipeline_mode = #tpu.pipeline_mode<synchronous>, transform_indices = @transform_6, window_bounds = array<i64: 2, 32, 32>}, {pipeline_mode = #tpu.pipeline_mode<synchronous>, transform_indices = @transform_7, window_bounds = array<i64: 2, 1, 32>}, {pipeline_mode = #tpu.pipeline_mode<synchronous>, transform_indices = @transform_8, window_bounds = array<i64: 2, 1, 32>}, {pipeline_mode = #tpu.pipeline_mode<synchronous>, transform_indices = @transform_9, window_bounds = array<i64: 2, 1, 32>}, {pipeline_mode = #tpu.pipeline_mode<synchronous>, transform_indices = @transform_10, window_bounds = array<i64: 2, 32, 64>}, {pipeline_mode = #tpu.pipeline_mode<synchronous>, transform_indices = @transform_11, window_bounds = array<i64: 2, 1, 64>}, {pipeline_mode = #tpu.pipeline_mode<synchronous>, transform_indices = @transform_12, window_bounds = array<i64: 2, 64, 32>}, {pipeline_mode = #tpu.pipeline_mode<synchronous>, transform_indices = @transform_13, window_bounds = array<i64: 2, 1, 32>}, {pipeline_mode = #tpu.pipeline_mode<synchronous>, transform_indices = @transform_14, window_bounds = array<i64: 2, 1, 32>}, {pipeline_mode = #tpu.pipeline_mode<synchronous>, transform_indices = @transform_15, window_bounds = array<i64: 2, 1, 32>}, {pipeline_mode = #tpu.pipeline_mode<synchronous>, transform_indices = @transform_16, window_bounds = array<i64: 2, 32>}]} {
    %c0 = arith.constant 0 : index
    %c0_0 = arith.constant 0 : index
    %c0_1 = arith.constant 0 : index
    %0 = vector.load %arg2[%c0, %c0_0, %c0_1] : memref<2x1x8xf32, #tpu.memory_space<vmem>>, vector<2x1x8xf32>
    %1 = vector.shape_cast %0 : vector<2x1x8xf32> to vector<2x1x8xf32>
    %2 = vector.broadcast %1 : vector<2x1x8xf32> to vector<2x8x8xf32>
    %c0_2 = arith.constant 0 : index
    %c0_3 = arith.constant 0 : index
    %3 = vector.load %arg1[%c0_2, %c0_3] : memref<16x32xf32, #tpu.memory_space<vmem>>, vector<16x32xf32>
    %c0_4 = arith.constant 0 : index
    %c0_5 = arith.constant 0 : index
    %4 = vector.load %arg3[%c0_4, %c0_5] : memref<1x32xf32, #tpu.memory_space<vmem>>, vector<1x32xf32>
    %c0_6 = arith.constant 0 : index
    %c0_7 = arith.constant 0 : index
    %5 = vector.load %arg4[%c0_6, %c0_7] : memref<1x32xf32, #tpu.memory_space<vmem>>, vector<1x32xf32>
    %cst = arith.constant dense<0.000000e+00> : vector<16xf32>
    %6 = vector.multi_reduction <add>, %3, %cst [1] : vector<16x32xf32> to vector<16xf32>
    %7 = vector.shape_cast %6 : vector<16xf32> to vector<16x1xf32>
    %8 = arith.mulf %3, %3 : vector<16x32xf32>
    %cst_8 = arith.constant dense<0.000000e+00> : vector<16xf32>
    %9 = vector.multi_reduction <add>, %8, %cst_8 [1] : vector<16x32xf32> to vector<16xf32>
    %10 = vector.shape_cast %9 : vector<16xf32> to vector<16x1xf32>
    %cst_9 = arith.constant 3.125000e-02 : f32
    %11 = vector.broadcast %cst_9 : f32 to vector<16x1xf32>
    %12 = arith.mulf %7, %11 : vector<16x1xf32>
    %cst_10 = arith.constant 3.125000e-02 : f32
    %13 = vector.broadcast %cst_10 : f32 to vector<16x1xf32>
    %14 = arith.mulf %10, %13 : vector<16x1xf32>
    %15 = arith.mulf %12, %12 : vector<16x1xf32>
    %16 = arith.subf %14, %15 : vector<16x1xf32>
    %17 = vector.broadcast %12 : vector<16x1xf32> to vector<16x32xf32>
    %18 = arith.subf %3, %17 : vector<16x32xf32>
    %cst_11 = arith.constant 9.99999996E-13 : f32
    %19 = vector.broadcast %cst_11 : f32 to vector<16x1xf32>
    %20 = arith.addf %16, %19 : vector<16x1xf32>
    %21 = math.rsqrt %20 : vector<16x1xf32>
    %22 = vector.broadcast %21 : vector<16x1xf32> to vector<16x32xf32>
    %23 = arith.mulf %18, %22 : vector<16x32xf32>
    %24 = vector.broadcast %4 : vector<1x32xf32> to vector<16x32xf32>
    %25 = arith.mulf %23, %24 : vector<16x32xf32>
    %26 = vector.broadcast %5 : vector<1x32xf32> to vector<16x32xf32>
    %27 = arith.addf %25, %26 : vector<16x32xf32>
    %28 = arith.truncf %27 : vector<16x32xf32> to vector<16x32xbf16>
    %c0_12 = arith.constant 0 : index
    %c0_13 = arith.constant 0 : index
    %c0_14 = arith.constant 0 : index
    %29 = vector.load %arg5[%c0_12, %c0_13, %c0_14] : memref<2x32x96xbf16, #tpu.memory_space<vmem>>, vector<1x32x96xbf16>
    %30 = vector.shape_cast %29 : vector<1x32x96xbf16> to vector<32x96xbf16>
    %cst_15 = arith.constant dense<0.000000e+00> : vector<16x96xf32>
    %31 = tpu.matmul %28, %30, %cst_15 {dimension_numbers = #tpu.dot_dimension_numbers<[1], [0], [0], [1], [0, 0, 1, 1], [], []>} : vector<16x32xbf16>, vector<32x96xbf16>, vector<16x96xf32> -> vector<16x96xf32>
    %c0_16 = arith.constant 0 : index
    %c0_17 = arith.constant 0 : index
    %c0_18 = arith.constant 0 : index
    %32 = vector.load %arg6[%c0_16, %c0_17, %c0_18] : memref<2x1x96xf32, #tpu.memory_space<vmem>>, vector<1x1x96xf32>
    %33 = vector.shape_cast %32 : vector<1x1x96xf32> to vector<1x96xf32>
    %34 = vector.broadcast %33 : vector<1x96xf32> to vector<16x96xf32>
    %35 = arith.addf %31, %34 : vector<16x96xf32>
    %36 = vector.extract_strided_slice %35 {offsets = [0, 0], sizes = [16, 32], strides = [1, 1]} : vector<16x96xf32> to vector<16x32xf32>
    %cst_19 = arith.constant 2.500000e-01 : f32
    %37 = vector.broadcast %cst_19 : f32 to vector<16x32xf32>
    %38 = arith.mulf %36, %37 : vector<16x32xf32>
    %39 = vector.shape_cast %38 : vector<16x32xf32> to vector<2x8x32xf32>
    %40 = vector.extract_strided_slice %35 {offsets = [0, 32], sizes = [16, 32], strides = [1, 1]} : vector<16x96xf32> to vector<16x32xf32>
    %41 = vector.shape_cast %40 : vector<16x32xf32> to vector<2x8x32xf32>
    %42 = vector.extract_strided_slice %35 {offsets = [0, 64], sizes = [16, 32], strides = [1, 1]} : vector<16x96xf32> to vector<16x32xf32>
    %43 = vector.shape_cast %42 : vector<16x32xf32> to vector<2x8x32xf32>
    %c0_20 = arith.constant 0 : index
    %c0_21 = arith.constant 0 : index
    %c0_22 = arith.constant 0 : index
    %44 = vector.load %arg8[%c0_20, %c0_21, %c0_22] : memref<2x1x32xf32, #tpu.memory_space<vmem>>, vector<1x1x32xf32>
    %45 = vector.shape_cast %44 : vector<1x1x32xf32> to vector<1x32xf32>
    %46 = vector.shape_cast %45 : vector<1x32xf32> to vector<1x32xf32>
    %47 = vector.broadcast %46 : vector<1x32xf32> to vector<16x32xf32>
    %48 = vector.extract_strided_slice %39 {offsets = [0, 0, 0], sizes = [2, 8, 16], strides = [1, 1, 1]} : vector<2x8x32xf32> to vector<2x8x16xf32>
    %49 = arith.truncf %48 : vector<2x8x16xf32> to vector<2x8x16xbf16>
    %50 = vector.extract_strided_slice %41 {offsets = [0, 0, 0], sizes = [2, 8, 16], strides = [1, 1, 1]} : vector<2x8x32xf32> to vector<2x8x16xf32>
    %51 = arith.truncf %50 : vector<2x8x16xf32> to vector<2x8x16xbf16>
    %52 = vector.extract_strided_slice %43 {offsets = [0, 0, 0], sizes = [2, 8, 16], strides = [1, 1, 1]} : vector<2x8x32xf32> to vector<2x8x16xf32>
    %53 = arith.truncf %52 : vector<2x8x16xf32> to vector<2x8x16xbf16>
    "tpu.trace_start"() <{level = 10 : i32, message = "bqd,bkd->bqk"}> : () -> ()
    %cst_23 = arith.constant dense<0.000000e+00> : vector<2x8x8xf32>
    %54 = tpu.matmul %49, %51, %cst_23 {dimension_numbers = #tpu.dot_dimension_numbers<[2], [2], [1], [1], [0, 0, 0, 1, 1, 1], [0], [0]>} : vector<2x8x16xbf16>, vector<2x8x16xbf16>, vector<2x8x8xf32> -> vector<2x8x8xf32>
    "tpu.trace_stop"() : () -> ()
    %55 = arith.addf %54, %2 : vector<2x8x8xf32>
    %cst_24 = arith.constant dense<0xFF800000> : vector<2x8xf32>
    %56 = vector.multi_reduction <maximumf>, %55, %cst_24 [2] : vector<2x8x8xf32> to vector<2x8xf32>
    %57 = vector.shape_cast %56 : vector<2x8xf32> to vector<2x8x1xf32>
    %58 = vector.broadcast %57 : vector<2x8x1xf32> to vector<2x8x8xf32>
    %59 = arith.subf %55, %58 : vector<2x8x8xf32>
    %60 = math.exp %59 : vector<2x8x8xf32>
    %cst_25 = arith.constant dense<0.000000e+00> : vector<2x8xf32>
    %61 = vector.multi_reduction <add>, %60, %cst_25 [2] : vector<2x8x8xf32> to vector<2x8xf32>
    %62 = vector.shape_cast %61 : vector<2x8xf32> to vector<2x8x1xf32>
    %63 = tpu.reciprocal %62 {approx = true} : vector<2x8x1xf32> -> vector<2x8x1xf32>
    %64 = vector.broadcast %63 : vector<2x8x1xf32> to vector<2x8x8xf32>
    %65 = arith.mulf %60, %64 : vector<2x8x8xf32>
    %66 = arith.truncf %65 : vector<2x8x8xf32> to vector<2x8x8xbf16>
    "tpu.trace_start"() <{level = 10 : i32, message = "bqk,bkd->bqd"}> : () -> ()
    %cst_26 = arith.constant dense<0.000000e+00> : vector<2x8x16xf32>
    %67 = tpu.matmul %66, %53, %cst_26 {dimension_numbers = #tpu.dot_dimension_numbers<[2], [1], [1], [2], [0, 0, 0, 1, 1, 2], [0], [0]>} : vector<2x8x8xbf16>, vector<2x8x16xbf16>, vector<2x8x16xf32> -> vector<2x8x16xf32>
    "tpu.trace_stop"() : () -> ()
    %68 = vector.shape_cast %67 : vector<2x8x16xf32> to vector<16x16xf32>
    %69 = arith.truncf %68 : vector<16x16xf32> to vector<16x16xbf16>
    %c0_27 = arith.constant 0 : index
    %c0_28 = arith.constant 0 : index
    %c0_29 = arith.constant 0 : index
    %70 = vector.load %arg7[%c0_27, %c0_28, %c0_29] : memref<2x32x32xbf16, #tpu.memory_space<vmem>>, vector<1x16x32xbf16>
    %71 = vector.shape_cast %70 : vector<1x16x32xbf16> to vector<16x32xbf16>
    %cst_30 = arith.constant dense<0.000000e+00> : vector<16x32xf32>
    %72 = tpu.matmul %69, %71, %cst_30 {dimension_numbers = #tpu.dot_dimension_numbers<[1], [0], [0], [1], [0, 0, 1, 1], [], []>} : vector<16x16xbf16>, vector<16x32xbf16>, vector<16x32xf32> -> vector<16x32xf32>
    %73 = arith.addf %47, %72 : vector<16x32xf32>
    %74 = vector.extract_strided_slice %39 {offsets = [0, 0, 16], sizes = [2, 8, 16], strides = [1, 1, 1]} : vector<2x8x32xf32> to vector<2x8x16xf32>
    %75 = arith.truncf %74 : vector<2x8x16xf32> to vector<2x8x16xbf16>
    %76 = vector.extract_strided_slice %41 {offsets = [0, 0, 16], sizes = [2, 8, 16], strides = [1, 1, 1]} : vector<2x8x32xf32> to vector<2x8x16xf32>
    %77 = arith.truncf %76 : vector<2x8x16xf32> to vector<2x8x16xbf16>
    %78 = vector.extract_strided_slice %43 {offsets = [0, 0, 16], sizes = [2, 8, 16], strides = [1, 1, 1]} : vector<2x8x32xf32> to vector<2x8x16xf32>
    %79 = arith.truncf %78 : vector<2x8x16xf32> to vector<2x8x16xbf16>
    "tpu.trace_start"() <{level = 10 : i32, message = "bqd,bkd->bqk"}> : () -> ()
    %cst_31 = arith.constant dense<0.000000e+00> : vector<2x8x8xf32>
    %80 = tpu.matmul %75, %77, %cst_31 {dimension_numbers = #tpu.dot_dimension_numbers<[2], [2], [1], [1], [0, 0, 0, 1, 1, 1], [0], [0]>} : vector<2x8x16xbf16>, vector<2x8x16xbf16>, vector<2x8x8xf32> -> vector<2x8x8xf32>
    "tpu.trace_stop"() : () -> ()
    %81 = arith.addf %80, %2 : vector<2x8x8xf32>
    %cst_32 = arith.constant dense<0xFF800000> : vector<2x8xf32>
    %82 = vector.multi_reduction <maximumf>, %81, %cst_32 [2] : vector<2x8x8xf32> to vector<2x8xf32>
    %83 = vector.shape_cast %82 : vector<2x8xf32> to vector<2x8x1xf32>
    %84 = vector.broadcast %83 : vector<2x8x1xf32> to vector<2x8x8xf32>
    %85 = arith.subf %81, %84 : vector<2x8x8xf32>
    %86 = math.exp %85 : vector<2x8x8xf32>
    %cst_33 = arith.constant dense<0.000000e+00> : vector<2x8xf32>
    %87 = vector.multi_reduction <add>, %86, %cst_33 [2] : vector<2x8x8xf32> to vector<2x8xf32>
    %88 = vector.shape_cast %87 : vector<2x8xf32> to vector<2x8x1xf32>
    %89 = tpu.reciprocal %88 {approx = true} : vector<2x8x1xf32> -> vector<2x8x1xf32>
    %90 = vector.broadcast %89 : vector<2x8x1xf32> to vector<2x8x8xf32>
    %91 = arith.mulf %86, %90 : vector<2x8x8xf32>
    %92 = arith.truncf %91 : vector<2x8x8xf32> to vector<2x8x8xbf16>
    "tpu.trace_start"() <{level = 10 : i32, message = "bqk,bkd->bqd"}> : () -> ()
    %cst_34 = arith.constant dense<0.000000e+00> : vector<2x8x16xf32>
    %93 = tpu.matmul %92, %79, %cst_34 {dimension_numbers = #tpu.dot_dimension_numbers<[2], [1], [1], [2], [0, 0, 0, 1, 1, 2], [0], [0]>} : vector<2x8x8xbf16>, vector<2x8x16xbf16>, vector<2x8x16xf32> -> vector<2x8x16xf32>
    "tpu.trace_stop"() : () -> ()
    %94 = vector.shape_cast %93 : vector<2x8x16xf32> to vector<16x16xf32>
    %95 = arith.truncf %94 : vector<16x16xf32> to vector<16x16xbf16>
    %c0_35 = arith.constant 0 : index
    %c16 = arith.constant 16 : index
    %c0_36 = arith.constant 0 : index
    %96 = vector.load %arg7[%c0_35, %c16, %c0_36] : memref<2x32x32xbf16, #tpu.memory_space<vmem>>, vector<1x16x32xbf16>
    %97 = vector.shape_cast %96 : vector<1x16x32xbf16> to vector<16x32xbf16>
    %cst_37 = arith.constant dense<0.000000e+00> : vector<16x32xf32>
    %98 = tpu.matmul %95, %97, %cst_37 {dimension_numbers = #tpu.dot_dimension_numbers<[1], [0], [0], [1], [0, 0, 1, 1], [], []>} : vector<16x16xbf16>, vector<16x32xbf16>, vector<16x32xf32> -> vector<16x32xf32>
    %99 = arith.addf %73, %98 : vector<16x32xf32>
    %100 = arith.addf %99, %27 : vector<16x32xf32>
    %c0_38 = arith.constant 0 : index
    %c0_39 = arith.constant 0 : index
    %c0_40 = arith.constant 0 : index
    %101 = vector.load %arg9[%c0_38, %c0_39, %c0_40] : memref<2x1x32xf32, #tpu.memory_space<vmem>>, vector<1x1x32xf32>
    %102 = vector.shape_cast %101 : vector<1x1x32xf32> to vector<1x32xf32>
    %c0_41 = arith.constant 0 : index
    %c0_42 = arith.constant 0 : index
    %c0_43 = arith.constant 0 : index
    %103 = vector.load %arg10[%c0_41, %c0_42, %c0_43] : memref<2x1x32xf32, #tpu.memory_space<vmem>>, vector<1x1x32xf32>
    %104 = vector.shape_cast %103 : vector<1x1x32xf32> to vector<1x32xf32>
    %cst_44 = arith.constant dense<0.000000e+00> : vector<16xf32>
    %105 = vector.multi_reduction <add>, %100, %cst_44 [1] : vector<16x32xf32> to vector<16xf32>
    %106 = vector.shape_cast %105 : vector<16xf32> to vector<16x1xf32>
    %107 = arith.mulf %100, %100 : vector<16x32xf32>
    %cst_45 = arith.constant dense<0.000000e+00> : vector<16xf32>
    %108 = vector.multi_reduction <add>, %107, %cst_45 [1] : vector<16x32xf32> to vector<16xf32>
    %109 = vector.shape_cast %108 : vector<16xf32> to vector<16x1xf32>
    %cst_46 = arith.constant 3.125000e-02 : f32
    %110 = vector.broadcast %cst_46 : f32 to vector<16x1xf32>
    %111 = arith.mulf %106, %110 : vector<16x1xf32>
    %cst_47 = arith.constant 3.125000e-02 : f32
    %112 = vector.broadcast %cst_47 : f32 to vector<16x1xf32>
    %113 = arith.mulf %109, %112 : vector<16x1xf32>
    %114 = arith.mulf %111, %111 : vector<16x1xf32>
    %115 = arith.subf %113, %114 : vector<16x1xf32>
    %116 = vector.broadcast %111 : vector<16x1xf32> to vector<16x32xf32>
    %117 = arith.subf %100, %116 : vector<16x32xf32>
    %cst_48 = arith.constant 9.99999996E-13 : f32
    %118 = vector.broadcast %cst_48 : f32 to vector<16x1xf32>
    %119 = arith.addf %115, %118 : vector<16x1xf32>
    %120 = math.rsqrt %119 : vector<16x1xf32>
    %121 = vector.broadcast %120 : vector<16x1xf32> to vector<16x32xf32>
    %122 = arith.mulf %117, %121 : vector<16x32xf32>
    %123 = vector.broadcast %102 : vector<1x32xf32> to vector<16x32xf32>
    %124 = arith.mulf %122, %123 : vector<16x32xf32>
    %125 = vector.broadcast %104 : vector<1x32xf32> to vector<16x32xf32>
    %126 = arith.addf %124, %125 : vector<16x32xf32>
    %127 = arith.truncf %126 : vector<16x32xf32> to vector<16x32xbf16>
    %c0_49 = arith.constant 0 : index
    %c0_50 = arith.constant 0 : index
    %c0_51 = arith.constant 0 : index
    %128 = vector.load %arg11[%c0_49, %c0_50, %c0_51] : memref<2x32x64xbf16, #tpu.memory_space<vmem>>, vector<1x32x64xbf16>
    %129 = vector.shape_cast %128 : vector<1x32x64xbf16> to vector<32x64xbf16>
    %cst_52 = arith.constant dense<0.000000e+00> : vector<16x64xf32>
    %130 = tpu.matmul %127, %129, %cst_52 {dimension_numbers = #tpu.dot_dimension_numbers<[1], [0], [0], [1], [0, 0, 1, 1], [], []>} : vector<16x32xbf16>, vector<32x64xbf16>, vector<16x64xf32> -> vector<16x64xf32>
    %c0_53 = arith.constant 0 : index
    %c0_54 = arith.constant 0 : index
    %c0_55 = arith.constant 0 : index
    %131 = vector.load %arg12[%c0_53, %c0_54, %c0_55] : memref<2x1x64xf32, #tpu.memory_space<vmem>>, vector<1x1x64xf32>
    %132 = vector.shape_cast %131 : vector<1x1x64xf32> to vector<1x64xf32>
    %133 = vector.broadcast %132 : vector<1x64xf32> to vector<16x64xf32>
    %134 = arith.addf %130, %133 : vector<16x64xf32>
    %cst_56 = arith.constant 5.000000e-01 : f32
    %135 = vector.broadcast %cst_56 : f32 to vector<16x64xf32>
    %136 = arith.mulf %135, %134 : vector<16x64xf32>
    %cst_57 = arith.constant 0.707106769 : f32
    %137 = vector.broadcast %cst_57 : f32 to vector<16x64xf32>
    %138 = arith.mulf %134, %137 : vector<16x64xf32>
    %139 = math.absf %138 : vector<16x64xf32>
    %cst_58 = arith.constant 0.327591091 : f32
    %140 = vector.broadcast %cst_58 : f32 to vector<16x64xf32>
    %141 = arith.mulf %140, %139 : vector<16x64xf32>
    %cst_59 = arith.constant 1.000000e+00 : f32
    %142 = vector.broadcast %cst_59 : f32 to vector<16x64xf32>
    %143 = arith.addf %142, %141 : vector<16x64xf32>
    %cst_60 = arith.constant 1.000000e+00 : f32
    %144 = vector.broadcast %cst_60 : f32 to vector<16x64xf32>
    %145 = arith.divf %144, %143 : vector<16x64xf32>
    %cst_61 = arith.constant 1.06140542 : f32
    %146 = vector.broadcast %cst_61 : f32 to vector<16x64xf32>
    %147 = arith.mulf %146, %145 : vector<16x64xf32>
    %cst_62 = arith.constant -1.45315206 : f32
    %148 = vector.broadcast %cst_62 : f32 to vector<16x64xf32>
    %149 = arith.addf %147, %148 : vector<16x64xf32>
    %150 = arith.mulf %149, %145 : vector<16x64xf32>
    %cst_63 = arith.constant 1.42141378 : f32
    %151 = vector.broadcast %cst_63 : f32 to vector<16x64xf32>
    %152 = arith.addf %150, %151 : vector<16x64xf32>
    %153 = arith.mulf %152, %145 : vector<16x64xf32>
    %cst_64 = arith.constant -0.284496725 : f32
    %154 = vector.broadcast %cst_64 : f32 to vector<16x64xf32>
    %155 = arith.addf %153, %154 : vector<16x64xf32>
    %156 = arith.mulf %155, %145 : vector<16x64xf32>
    %cst_65 = arith.constant 0.254829586 : f32
    %157 = vector.broadcast %cst_65 : f32 to vector<16x64xf32>
    %158 = arith.addf %156, %157 : vector<16x64xf32>
    %159 = arith.mulf %158, %145 : vector<16x64xf32>
    %cst_66 = arith.constant 0.000000e+00 : f32
    %160 = vector.broadcast %cst_66 : f32 to vector<16x64xf32>
    %161 = arith.subf %160, %139 : vector<16x64xf32>
    %162 = arith.mulf %161, %139 : vector<16x64xf32>
    %163 = math.exp %162 : vector<16x64xf32>
    %164 = arith.mulf %159, %163 : vector<16x64xf32>
    %cst_67 = arith.constant 1.000000e+00 : f32
    %165 = vector.broadcast %cst_67 : f32 to vector<16x64xf32>
    %166 = arith.subf %165, %164 : vector<16x64xf32>
    %cst_68 = arith.constant 0.000000e+00 : f32
    %167 = vector.broadcast %cst_68 : f32 to vector<16x64xf32>
    %168 = arith.cmpf oge, %138, %167 : vector<16x64xf32>
    %cst_69 = arith.constant 0.000000e+00 : f32
    %169 = vector.broadcast %cst_69 : f32 to vector<16x64xf32>
    %170 = arith.subf %169, %166 : vector<16x64xf32>
    %171 = arith.select %168, %166, %170 : vector<16x64xi1>, vector<16x64xf32>
    %cst_70 = arith.constant 1.000000e+00 : f32
    %172 = vector.broadcast %cst_70 : f32 to vector<16x64xf32>
    %173 = arith.addf %172, %171 : vector<16x64xf32>
    %174 = arith.mulf %136, %173 : vector<16x64xf32>
    %175 = arith.truncf %174 : vector<16x64xf32> to vector<16x64xbf16>
    %c0_71 = arith.constant 0 : index
    %c0_72 = arith.constant 0 : index
    %c0_73 = arith.constant 0 : index
    %176 = vector.load %arg13[%c0_71, %c0_72, %c0_73] : memref<2x64x32xbf16, #tpu.memory_space<vmem>>, vector<1x64x32xbf16>
    %177 = vector.shape_cast %176 : vector<1x64x32xbf16> to vector<64x32xbf16>
    %cst_74 = arith.constant dense<0.000000e+00> : vector<16x32xf32>
    %178 = tpu.matmul %175, %177, %cst_74 {dimension_numbers = #tpu.dot_dimension_numbers<[1], [0], [0], [1], [0, 0, 1, 1], [], []>} : vector<16x64xbf16>, vector<64x32xbf16>, vector<16x32xf32> -> vector<16x32xf32>
    %c0_75 = arith.constant 0 : index
    %c0_76 = arith.constant 0 : index
    %c0_77 = arith.constant 0 : index
    %179 = vector.load %arg14[%c0_75, %c0_76, %c0_77] : memref<2x1x32xf32, #tpu.memory_space<vmem>>, vector<1x1x32xf32>
    %180 = vector.shape_cast %179 : vector<1x1x32xf32> to vector<1x32xf32>
    %181 = vector.broadcast %180 : vector<1x32xf32> to vector<16x32xf32>
    %182 = arith.addf %178, %181 : vector<16x32xf32>
    %183 = arith.addf %182, %126 : vector<16x32xf32>
    %c0_78 = arith.constant 0 : index
    %c0_79 = arith.constant 0 : index
    %c0_80 = arith.constant 0 : index
    %184 = vector.load %arg15[%c0_78, %c0_79, %c0_80] : memref<2x1x32xf32, #tpu.memory_space<vmem>>, vector<1x1x32xf32>
    %185 = vector.shape_cast %184 : vector<1x1x32xf32> to vector<1x32xf32>
    %c0_81 = arith.constant 0 : index
    %c0_82 = arith.constant 0 : index
    %c0_83 = arith.constant 0 : index
    %186 = vector.load %arg16[%c0_81, %c0_82, %c0_83] : memref<2x1x32xf32, #tpu.memory_space<vmem>>, vector<1x1x32xf32>
    %187 = vector.shape_cast %186 : vector<1x1x32xf32> to vector<1x32xf32>
    %cst_84 = arith.constant dense<0.000000e+00> : vector<16xf32>
    %188 = vector.multi_reduction <add>, %183, %cst_84 [1] : vector<16x32xf32> to vector<16xf32>
    %189 = vector.shape_cast %188 : vector<16xf32> to vector<16x1xf32>
    %190 = arith.mulf %183, %183 : vector<16x32xf32>
    %cst_85 = arith.constant dense<0.000000e+00> : vector<16xf32>
    %191 = vector.multi_reduction <add>, %190, %cst_85 [1] : vector<16x32xf32> to vector<16xf32>
    %192 = vector.shape_cast %191 : vector<16xf32> to vector<16x1xf32>
    %cst_86 = arith.constant 3.125000e-02 : f32
    %193 = vector.broadcast %cst_86 : f32 to vector<16x1xf32>
    %194 = arith.mulf %189, %193 : vector<16x1xf32>
    %cst_87 = arith.constant 3.125000e-02 : f32
    %195 = vector.broadcast %cst_87 : f32 to vector<16x1xf32>
    %196 = arith.mulf %192, %195 : vector<16x1xf32>
    %197 = arith.mulf %194, %194 : vector<16x1xf32>
    %198 = arith.subf %196, %197 : vector<16x1xf32>
    %199 = vector.broadcast %194 : vector<16x1xf32> to vector<16x32xf32>
    %200 = arith.subf %183, %199 : vector<16x32xf32>
    %cst_88 = arith.constant 9.99999996E-13 : f32
    %201 = vector.broadcast %cst_88 : f32 to vector<16x1xf32>
    %202 = arith.addf %198, %201 : vector<16x1xf32>
    %203 = math.rsqrt %202 : vector<16x1xf32>
    %204 = vector.broadcast %203 : vector<16x1xf32> to vector<16x32xf32>
    %205 = arith.mulf %200, %204 : vector<16x32xf32>
    %206 = vector.broadcast %185 : vector<1x32xf32> to vector<16x32xf32>
    %207 = arith.mulf %205, %206 : vector<16x32xf32>
    %208 = vector.broadcast %187 : vector<1x32xf32> to vector<16x32xf32>
    %209 = arith.addf %207, %208 : vector<16x32xf32>
    %210 = arith.truncf %209 : vector<16x32xf32> to vector<16x32xbf16>
    %c1 = arith.constant 1 : index
    %c0_89 = arith.constant 0 : index
    %c0_90 = arith.constant 0 : index
    %211 = vector.load %arg5[%c1, %c0_89, %c0_90] : memref<2x32x96xbf16, #tpu.memory_space<vmem>>, vector<1x32x96xbf16>
    %212 = vector.shape_cast %211 : vector<1x32x96xbf16> to vector<32x96xbf16>
    %cst_91 = arith.constant dense<0.000000e+00> : vector<16x96xf32>
    %213 = tpu.matmul %210, %212, %cst_91 {dimension_numbers = #tpu.dot_dimension_numbers<[1], [0], [0], [1], [0, 0, 1, 1], [], []>} : vector<16x32xbf16>, vector<32x96xbf16>, vector<16x96xf32> -> vector<16x96xf32>
    %c1_92 = arith.constant 1 : index
    %c0_93 = arith.constant 0 : index
    %c0_94 = arith.constant 0 : index
    %214 = vector.load %arg6[%c1_92, %c0_93, %c0_94] : memref<2x1x96xf32, #tpu.memory_space<vmem>>, vector<1x1x96xf32>
    %215 = vector.shape_cast %214 : vector<1x1x96xf32> to vector<1x96xf32>
    %216 = vector.broadcast %215 : vector<1x96xf32> to vector<16x96xf32>
    %217 = arith.addf %213, %216 : vector<16x96xf32>
    %218 = vector.extract_strided_slice %217 {offsets = [0, 0], sizes = [16, 32], strides = [1, 1]} : vector<16x96xf32> to vector<16x32xf32>
    %cst_95 = arith.constant 2.500000e-01 : f32
    %219 = vector.broadcast %cst_95 : f32 to vector<16x32xf32>
    %220 = arith.mulf %218, %219 : vector<16x32xf32>
    %221 = vector.shape_cast %220 : vector<16x32xf32> to vector<2x8x32xf32>
    %222 = vector.extract_strided_slice %217 {offsets = [0, 32], sizes = [16, 32], strides = [1, 1]} : vector<16x96xf32> to vector<16x32xf32>
    %223 = vector.shape_cast %222 : vector<16x32xf32> to vector<2x8x32xf32>
    %224 = vector.extract_strided_slice %217 {offsets = [0, 64], sizes = [16, 32], strides = [1, 1]} : vector<16x96xf32> to vector<16x32xf32>
    %225 = vector.shape_cast %224 : vector<16x32xf32> to vector<2x8x32xf32>
    %c1_96 = arith.constant 1 : index
    %c0_97 = arith.constant 0 : index
    %c0_98 = arith.constant 0 : index
    %226 = vector.load %arg8[%c1_96, %c0_97, %c0_98] : memref<2x1x32xf32, #tpu.memory_space<vmem>>, vector<1x1x32xf32>
    %227 = vector.shape_cast %226 : vector<1x1x32xf32> to vector<1x32xf32>
    %228 = vector.shape_cast %227 : vector<1x32xf32> to vector<1x32xf32>
    %229 = vector.broadcast %228 : vector<1x32xf32> to vector<16x32xf32>
    %230 = vector.extract_strided_slice %221 {offsets = [0, 0, 0], sizes = [2, 8, 16], strides = [1, 1, 1]} : vector<2x8x32xf32> to vector<2x8x16xf32>
    %231 = arith.truncf %230 : vector<2x8x16xf32> to vector<2x8x16xbf16>
    %232 = vector.extract_strided_slice %223 {offsets = [0, 0, 0], sizes = [2, 8, 16], strides = [1, 1, 1]} : vector<2x8x32xf32> to vector<2x8x16xf32>
    %233 = arith.truncf %232 : vector<2x8x16xf32> to vector<2x8x16xbf16>
    %234 = vector.extract_strided_slice %225 {offsets = [0, 0, 0], sizes = [2, 8, 16], strides = [1, 1, 1]} : vector<2x8x32xf32> to vector<2x8x16xf32>
    %235 = arith.truncf %234 : vector<2x8x16xf32> to vector<2x8x16xbf16>
    "tpu.trace_start"() <{level = 10 : i32, message = "bqd,bkd->bqk"}> : () -> ()
    %cst_99 = arith.constant dense<0.000000e+00> : vector<2x8x8xf32>
    %236 = tpu.matmul %231, %233, %cst_99 {dimension_numbers = #tpu.dot_dimension_numbers<[2], [2], [1], [1], [0, 0, 0, 1, 1, 1], [0], [0]>} : vector<2x8x16xbf16>, vector<2x8x16xbf16>, vector<2x8x8xf32> -> vector<2x8x8xf32>
    "tpu.trace_stop"() : () -> ()
    %237 = arith.addf %236, %2 : vector<2x8x8xf32>
    %cst_100 = arith.constant dense<0xFF800000> : vector<2x8xf32>
    %238 = vector.multi_reduction <maximumf>, %237, %cst_100 [2] : vector<2x8x8xf32> to vector<2x8xf32>
    %239 = vector.shape_cast %238 : vector<2x8xf32> to vector<2x8x1xf32>
    %240 = vector.broadcast %239 : vector<2x8x1xf32> to vector<2x8x8xf32>
    %241 = arith.subf %237, %240 : vector<2x8x8xf32>
    %242 = math.exp %241 : vector<2x8x8xf32>
    %cst_101 = arith.constant dense<0.000000e+00> : vector<2x8xf32>
    %243 = vector.multi_reduction <add>, %242, %cst_101 [2] : vector<2x8x8xf32> to vector<2x8xf32>
    %244 = vector.shape_cast %243 : vector<2x8xf32> to vector<2x8x1xf32>
    %245 = tpu.reciprocal %244 {approx = true} : vector<2x8x1xf32> -> vector<2x8x1xf32>
    %246 = vector.broadcast %245 : vector<2x8x1xf32> to vector<2x8x8xf32>
    %247 = arith.mulf %242, %246 : vector<2x8x8xf32>
    %248 = arith.truncf %247 : vector<2x8x8xf32> to vector<2x8x8xbf16>
    "tpu.trace_start"() <{level = 10 : i32, message = "bqk,bkd->bqd"}> : () -> ()
    %cst_102 = arith.constant dense<0.000000e+00> : vector<2x8x16xf32>
    %249 = tpu.matmul %248, %235, %cst_102 {dimension_numbers = #tpu.dot_dimension_numbers<[2], [1], [1], [2], [0, 0, 0, 1, 1, 2], [0], [0]>} : vector<2x8x8xbf16>, vector<2x8x16xbf16>, vector<2x8x16xf32> -> vector<2x8x16xf32>
    "tpu.trace_stop"() : () -> ()
    %250 = vector.shape_cast %249 : vector<2x8x16xf32> to vector<16x16xf32>
    %251 = arith.truncf %250 : vector<16x16xf32> to vector<16x16xbf16>
    %c1_103 = arith.constant 1 : index
    %c0_104 = arith.constant 0 : index
    %c0_105 = arith.constant 0 : index
    %252 = vector.load %arg7[%c1_103, %c0_104, %c0_105] : memref<2x32x32xbf16, #tpu.memory_space<vmem>>, vector<1x16x32xbf16>
    %253 = vector.shape_cast %252 : vector<1x16x32xbf16> to vector<16x32xbf16>
    %cst_106 = arith.constant dense<0.000000e+00> : vector<16x32xf32>
    %254 = tpu.matmul %251, %253, %cst_106 {dimension_numbers = #tpu.dot_dimension_numbers<[1], [0], [0], [1], [0, 0, 1, 1], [], []>} : vector<16x16xbf16>, vector<16x32xbf16>, vector<16x32xf32> -> vector<16x32xf32>
    %255 = arith.addf %229, %254 : vector<16x32xf32>
    %256 = vector.extract_strided_slice %221 {offsets = [0, 0, 16], sizes = [2, 8, 16], strides = [1, 1, 1]} : vector<2x8x32xf32> to vector<2x8x16xf32>
    %257 = arith.truncf %256 : vector<2x8x16xf32> to vector<2x8x16xbf16>
    %258 = vector.extract_strided_slice %223 {offsets = [0, 0, 16], sizes = [2, 8, 16], strides = [1, 1, 1]} : vector<2x8x32xf32> to vector<2x8x16xf32>
    %259 = arith.truncf %258 : vector<2x8x16xf32> to vector<2x8x16xbf16>
    %260 = vector.extract_strided_slice %225 {offsets = [0, 0, 16], sizes = [2, 8, 16], strides = [1, 1, 1]} : vector<2x8x32xf32> to vector<2x8x16xf32>
    %261 = arith.truncf %260 : vector<2x8x16xf32> to vector<2x8x16xbf16>
    "tpu.trace_start"() <{level = 10 : i32, message = "bqd,bkd->bqk"}> : () -> ()
    %cst_107 = arith.constant dense<0.000000e+00> : vector<2x8x8xf32>
    %262 = tpu.matmul %257, %259, %cst_107 {dimension_numbers = #tpu.dot_dimension_numbers<[2], [2], [1], [1], [0, 0, 0, 1, 1, 1], [0], [0]>} : vector<2x8x16xbf16>, vector<2x8x16xbf16>, vector<2x8x8xf32> -> vector<2x8x8xf32>
    "tpu.trace_stop"() : () -> ()
    %263 = arith.addf %262, %2 : vector<2x8x8xf32>
    %cst_108 = arith.constant dense<0xFF800000> : vector<2x8xf32>
    %264 = vector.multi_reduction <maximumf>, %263, %cst_108 [2] : vector<2x8x8xf32> to vector<2x8xf32>
    %265 = vector.shape_cast %264 : vector<2x8xf32> to vector<2x8x1xf32>
    %266 = vector.broadcast %265 : vector<2x8x1xf32> to vector<2x8x8xf32>
    %267 = arith.subf %263, %266 : vector<2x8x8xf32>
    %268 = math.exp %267 : vector<2x8x8xf32>
    %cst_109 = arith.constant dense<0.000000e+00> : vector<2x8xf32>
    %269 = vector.multi_reduction <add>, %268, %cst_109 [2] : vector<2x8x8xf32> to vector<2x8xf32>
    %270 = vector.shape_cast %269 : vector<2x8xf32> to vector<2x8x1xf32>
    %271 = tpu.reciprocal %270 {approx = true} : vector<2x8x1xf32> -> vector<2x8x1xf32>
    %272 = vector.broadcast %271 : vector<2x8x1xf32> to vector<2x8x8xf32>
    %273 = arith.mulf %268, %272 : vector<2x8x8xf32>
    %274 = arith.truncf %273 : vector<2x8x8xf32> to vector<2x8x8xbf16>
    "tpu.trace_start"() <{level = 10 : i32, message = "bqk,bkd->bqd"}> : () -> ()
    %cst_110 = arith.constant dense<0.000000e+00> : vector<2x8x16xf32>
    %275 = tpu.matmul %274, %261, %cst_110 {dimension_numbers = #tpu.dot_dimension_numbers<[2], [1], [1], [2], [0, 0, 0, 1, 1, 2], [0], [0]>} : vector<2x8x8xbf16>, vector<2x8x16xbf16>, vector<2x8x16xf32> -> vector<2x8x16xf32>
    "tpu.trace_stop"() : () -> ()
    %276 = vector.shape_cast %275 : vector<2x8x16xf32> to vector<16x16xf32>
    %277 = arith.truncf %276 : vector<16x16xf32> to vector<16x16xbf16>
    %c1_111 = arith.constant 1 : index
    %c16_112 = arith.constant 16 : index
    %c0_113 = arith.constant 0 : index
    %278 = vector.load %arg7[%c1_111, %c16_112, %c0_113] : memref<2x32x32xbf16, #tpu.memory_space<vmem>>, vector<1x16x32xbf16>
    %279 = vector.shape_cast %278 : vector<1x16x32xbf16> to vector<16x32xbf16>
    %cst_114 = arith.constant dense<0.000000e+00> : vector<16x32xf32>
    %280 = tpu.matmul %277, %279, %cst_114 {dimension_numbers = #tpu.dot_dimension_numbers<[1], [0], [0], [1], [0, 0, 1, 1], [], []>} : vector<16x16xbf16>, vector<16x32xbf16>, vector<16x32xf32> -> vector<16x32xf32>
    %281 = arith.addf %255, %280 : vector<16x32xf32>
    %282 = arith.addf %281, %209 : vector<16x32xf32>
    %c1_115 = arith.constant 1 : index
    %c0_116 = arith.constant 0 : index
    %c0_117 = arith.constant 0 : index
    %283 = vector.load %arg9[%c1_115, %c0_116, %c0_117] : memref<2x1x32xf32, #tpu.memory_space<vmem>>, vector<1x1x32xf32>
    %284 = vector.shape_cast %283 : vector<1x1x32xf32> to vector<1x32xf32>
    %c1_118 = arith.constant 1 : index
    %c0_119 = arith.constant 0 : index
    %c0_120 = arith.constant 0 : index
    %285 = vector.load %arg10[%c1_118, %c0_119, %c0_120] : memref<2x1x32xf32, #tpu.memory_space<vmem>>, vector<1x1x32xf32>
    %286 = vector.shape_cast %285 : vector<1x1x32xf32> to vector<1x32xf32>
    %cst_121 = arith.constant dense<0.000000e+00> : vector<16xf32>
    %287 = vector.multi_reduction <add>, %282, %cst_121 [1] : vector<16x32xf32> to vector<16xf32>
    %288 = vector.shape_cast %287 : vector<16xf32> to vector<16x1xf32>
    %289 = arith.mulf %282, %282 : vector<16x32xf32>
    %cst_122 = arith.constant dense<0.000000e+00> : vector<16xf32>
    %290 = vector.multi_reduction <add>, %289, %cst_122 [1] : vector<16x32xf32> to vector<16xf32>
    %291 = vector.shape_cast %290 : vector<16xf32> to vector<16x1xf32>
    %cst_123 = arith.constant 3.125000e-02 : f32
    %292 = vector.broadcast %cst_123 : f32 to vector<16x1xf32>
    %293 = arith.mulf %288, %292 : vector<16x1xf32>
    %cst_124 = arith.constant 3.125000e-02 : f32
    %294 = vector.broadcast %cst_124 : f32 to vector<16x1xf32>
    %295 = arith.mulf %291, %294 : vector<16x1xf32>
    %296 = arith.mulf %293, %293 : vector<16x1xf32>
    %297 = arith.subf %295, %296 : vector<16x1xf32>
    %298 = vector.broadcast %293 : vector<16x1xf32> to vector<16x32xf32>
    %299 = arith.subf %282, %298 : vector<16x32xf32>
    %cst_125 = arith.constant 9.99999996E-13 : f32
    %300 = vector.broadcast %cst_125 : f32 to vector<16x1xf32>
    %301 = arith.addf %297, %300 : vector<16x1xf32>
    %302 = math.rsqrt %301 : vector<16x1xf32>
    %303 = vector.broadcast %302 : vector<16x1xf32> to vector<16x32xf32>
    %304 = arith.mulf %299, %303 : vector<16x32xf32>
    %305 = vector.broadcast %284 : vector<1x32xf32> to vector<16x32xf32>
    %306 = arith.mulf %304, %305 : vector<16x32xf32>
    %307 = vector.broadcast %286 : vector<1x32xf32> to vector<16x32xf32>
    %308 = arith.addf %306, %307 : vector<16x32xf32>
    %309 = arith.truncf %308 : vector<16x32xf32> to vector<16x32xbf16>
    %c1_126 = arith.constant 1 : index
    %c0_127 = arith.constant 0 : index
    %c0_128 = arith.constant 0 : index
    %310 = vector.load %arg11[%c1_126, %c0_127, %c0_128] : memref<2x32x64xbf16, #tpu.memory_space<vmem>>, vector<1x32x64xbf16>
    %311 = vector.shape_cast %310 : vector<1x32x64xbf16> to vector<32x64xbf16>
    %cst_129 = arith.constant dense<0.000000e+00> : vector<16x64xf32>
    %312 = tpu.matmul %309, %311, %cst_129 {dimension_numbers = #tpu.dot_dimension_numbers<[1], [0], [0], [1], [0, 0, 1, 1], [], []>} : vector<16x32xbf16>, vector<32x64xbf16>, vector<16x64xf32> -> vector<16x64xf32>
    %c1_130 = arith.constant 1 : index
    %c0_131 = arith.constant 0 : index
    %c0_132 = arith.constant 0 : index
    %313 = vector.load %arg12[%c1_130, %c0_131, %c0_132] : memref<2x1x64xf32, #tpu.memory_space<vmem>>, vector<1x1x64xf32>
    %314 = vector.shape_cast %313 : vector<1x1x64xf32> to vector<1x64xf32>
    %315 = vector.broadcast %314 : vector<1x64xf32> to vector<16x64xf32>
    %316 = arith.addf %312, %315 : vector<16x64xf32>
    %cst_133 = arith.constant 5.000000e-01 : f32
    %317 = vector.broadcast %cst_133 : f32 to vector<16x64xf32>
    %318 = arith.mulf %317, %316 : vector<16x64xf32>
    %cst_134 = arith.constant 0.707106769 : f32
    %319 = vector.broadcast %cst_134 : f32 to vector<16x64xf32>
    %320 = arith.mulf %316, %319 : vector<16x64xf32>
    %321 = math.absf %320 : vector<16x64xf32>
    %cst_135 = arith.constant 0.327591091 : f32
    %322 = vector.broadcast %cst_135 : f32 to vector<16x64xf32>
    %323 = arith.mulf %322, %321 : vector<16x64xf32>
    %cst_136 = arith.constant 1.000000e+00 : f32
    %324 = vector.broadcast %cst_136 : f32 to vector<16x64xf32>
    %325 = arith.addf %324, %323 : vector<16x64xf32>
    %cst_137 = arith.constant 1.000000e+00 : f32
    %326 = vector.broadcast %cst_137 : f32 to vector<16x64xf32>
    %327 = arith.divf %326, %325 : vector<16x64xf32>
    %cst_138 = arith.constant 1.06140542 : f32
    %328 = vector.broadcast %cst_138 : f32 to vector<16x64xf32>
    %329 = arith.mulf %328, %327 : vector<16x64xf32>
    %cst_139 = arith.constant -1.45315206 : f32
    %330 = vector.broadcast %cst_139 : f32 to vector<16x64xf32>
    %331 = arith.addf %329, %330 : vector<16x64xf32>
    %332 = arith.mulf %331, %327 : vector<16x64xf32>
    %cst_140 = arith.constant 1.42141378 : f32
    %333 = vector.broadcast %cst_140 : f32 to vector<16x64xf32>
    %334 = arith.addf %332, %333 : vector<16x64xf32>
    %335 = arith.mulf %334, %327 : vector<16x64xf32>
    %cst_141 = arith.constant -0.284496725 : f32
    %336 = vector.broadcast %cst_141 : f32 to vector<16x64xf32>
    %337 = arith.addf %335, %336 : vector<16x64xf32>
    %338 = arith.mulf %337, %327 : vector<16x64xf32>
    %cst_142 = arith.constant 0.254829586 : f32
    %339 = vector.broadcast %cst_142 : f32 to vector<16x64xf32>
    %340 = arith.addf %338, %339 : vector<16x64xf32>
    %341 = arith.mulf %340, %327 : vector<16x64xf32>
    %cst_143 = arith.constant 0.000000e+00 : f32
    %342 = vector.broadcast %cst_143 : f32 to vector<16x64xf32>
    %343 = arith.subf %342, %321 : vector<16x64xf32>
    %344 = arith.mulf %343, %321 : vector<16x64xf32>
    %345 = math.exp %344 : vector<16x64xf32>
    %346 = arith.mulf %341, %345 : vector<16x64xf32>
    %cst_144 = arith.constant 1.000000e+00 : f32
    %347 = vector.broadcast %cst_144 : f32 to vector<16x64xf32>
    %348 = arith.subf %347, %346 : vector<16x64xf32>
    %cst_145 = arith.constant 0.000000e+00 : f32
    %349 = vector.broadcast %cst_145 : f32 to vector<16x64xf32>
    %350 = arith.cmpf oge, %320, %349 : vector<16x64xf32>
    %cst_146 = arith.constant 0.000000e+00 : f32
    %351 = vector.broadcast %cst_146 : f32 to vector<16x64xf32>
    %352 = arith.subf %351, %348 : vector<16x64xf32>
    %353 = arith.select %350, %348, %352 : vector<16x64xi1>, vector<16x64xf32>
    %cst_147 = arith.constant 1.000000e+00 : f32
    %354 = vector.broadcast %cst_147 : f32 to vector<16x64xf32>
    %355 = arith.addf %354, %353 : vector<16x64xf32>
    %356 = arith.mulf %318, %355 : vector<16x64xf32>
    %357 = arith.truncf %356 : vector<16x64xf32> to vector<16x64xbf16>
    %c1_148 = arith.constant 1 : index
    %c0_149 = arith.constant 0 : index
    %c0_150 = arith.constant 0 : index
    %358 = vector.load %arg13[%c1_148, %c0_149, %c0_150] : memref<2x64x32xbf16, #tpu.memory_space<vmem>>, vector<1x64x32xbf16>
    %359 = vector.shape_cast %358 : vector<1x64x32xbf16> to vector<64x32xbf16>
    %cst_151 = arith.constant dense<0.000000e+00> : vector<16x32xf32>
    %360 = tpu.matmul %357, %359, %cst_151 {dimension_numbers = #tpu.dot_dimension_numbers<[1], [0], [0], [1], [0, 0, 1, 1], [], []>} : vector<16x64xbf16>, vector<64x32xbf16>, vector<16x32xf32> -> vector<16x32xf32>
    %c1_152 = arith.constant 1 : index
    %c0_153 = arith.constant 0 : index
    %c0_154 = arith.constant 0 : index
    %361 = vector.load %arg14[%c1_152, %c0_153, %c0_154] : memref<2x1x32xf32, #tpu.memory_space<vmem>>, vector<1x1x32xf32>
    %362 = vector.shape_cast %361 : vector<1x1x32xf32> to vector<1x32xf32>
    %363 = vector.broadcast %362 : vector<1x32xf32> to vector<16x32xf32>
    %364 = arith.addf %360, %363 : vector<16x32xf32>
    %365 = arith.addf %364, %308 : vector<16x32xf32>
    %c1_155 = arith.constant 1 : index
    %c0_156 = arith.constant 0 : index
    %c0_157 = arith.constant 0 : index
    %366 = vector.load %arg15[%c1_155, %c0_156, %c0_157] : memref<2x1x32xf32, #tpu.memory_space<vmem>>, vector<1x1x32xf32>
    %367 = vector.shape_cast %366 : vector<1x1x32xf32> to vector<1x32xf32>
    %c1_158 = arith.constant 1 : index
    %c0_159 = arith.constant 0 : index
    %c0_160 = arith.constant 0 : index
    %368 = vector.load %arg16[%c1_158, %c0_159, %c0_160] : memref<2x1x32xf32, #tpu.memory_space<vmem>>, vector<1x1x32xf32>
    %369 = vector.shape_cast %368 : vector<1x1x32xf32> to vector<1x32xf32>
    %cst_161 = arith.constant dense<0.000000e+00> : vector<16xf32>
    %370 = vector.multi_reduction <add>, %365, %cst_161 [1] : vector<16x32xf32> to vector<16xf32>
    %371 = vector.shape_cast %370 : vector<16xf32> to vector<16x1xf32>
    %372 = arith.mulf %365, %365 : vector<16x32xf32>
    %cst_162 = arith.constant dense<0.000000e+00> : vector<16xf32>
    %373 = vector.multi_reduction <add>, %372, %cst_162 [1] : vector<16x32xf32> to vector<16xf32>
    %374 = vector.shape_cast %373 : vector<16xf32> to vector<16x1xf32>
    %cst_163 = arith.constant 3.125000e-02 : f32
    %375 = vector.broadcast %cst_163 : f32 to vector<16x1xf32>
    %376 = arith.mulf %371, %375 : vector<16x1xf32>
    %cst_164 = arith.constant 3.125000e-02 : f32
    %377 = vector.broadcast %cst_164 : f32 to vector<16x1xf32>
    %378 = arith.mulf %374, %377 : vector<16x1xf32>
    %379 = arith.mulf %376, %376 : vector<16x1xf32>
    %380 = arith.subf %378, %379 : vector<16x1xf32>
    %381 = vector.broadcast %376 : vector<16x1xf32> to vector<16x32xf32>
    %382 = arith.subf %365, %381 : vector<16x32xf32>
    %cst_165 = arith.constant 9.99999996E-13 : f32
    %383 = vector.broadcast %cst_165 : f32 to vector<16x1xf32>
    %384 = arith.addf %380, %383 : vector<16x1xf32>
    %385 = math.rsqrt %384 : vector<16x1xf32>
    %386 = vector.broadcast %385 : vector<16x1xf32> to vector<16x32xf32>
    %387 = arith.mulf %382, %386 : vector<16x32xf32>
    %388 = vector.broadcast %367 : vector<1x32xf32> to vector<16x32xf32>
    %389 = arith.mulf %387, %388 : vector<16x32xf32>
    %390 = vector.broadcast %369 : vector<1x32xf32> to vector<16x32xf32>
    %391 = arith.addf %389, %390 : vector<16x32xf32>
    %392 = vector.extract_strided_slice %391 {offsets = [0, 0], sizes = [1, 32], strides = [1, 1]} : vector<16x32xf32> to vector<1x32xf32>
    %c0_166 = arith.constant 0 : index
    %c0_167 = arith.constant 0 : index
    %393 = vector.load %arg17[%c0_166, %c0_167] : memref<2x32xf32, #tpu.memory_space<vmem>>, vector<1x32xf32>
    tpu.vector_store %arg17[%c0_166, %c0_167], %392 {strides = array<i32>} : memref<2x32xf32, #tpu.memory_space<vmem>>, vector<1x32xf32>,
    %394 = vector.extract_strided_slice %391 {offsets = [8, 0], sizes = [1, 32], strides = [1, 1]} : vector<16x32xf32> to vector<1x32xf32>
    %c1_168 = arith.constant 1 : index
    %c0_169 = arith.constant 0 : index
    %395 = vector.load %arg17[%c1_168, %c0_169] : memref<2x32xf32, #tpu.memory_space<vmem>>, vector<1x32xf32>
    tpu.vector_store %arg17[%c1_168, %c0_169], %394 {strides = array<i32>} : memref<2x32xf32, #tpu.memory_space<vmem>>, vector<1x32xf32>,
    return
  }
  func.func @transform_0(%arg0: i32) -> (i32, i32) {
    %c0_i32 = arith.constant 0 : i32
    %c0_i32_0 = arith.constant 0 : i32
    %c0_i32_1 = arith.constant 0 : i32
    return %c0_i32, %c0_i32_0 : i32, i32
  }
  func.func @transform_1(%arg0: i32) -> (i32, i32, i32) {
    %c0_i32 = arith.constant 0 : i32
    %c0_i32_0 = arith.constant 0 : i32
    %c0_i32_1 = arith.constant 0 : i32
    %c0_i32_2 = arith.constant 0 : i32
    return %c0_i32, %c0_i32_0, %c0_i32_1 : i32, i32, i32
  }
  func.func @transform_2(%arg0: i32) -> (i32, i32) {
    %c0_i32 = arith.constant 0 : i32
    %c0_i32_0 = arith.constant 0 : i32
    %c0_i32_1 = arith.constant 0 : i32
    return %c0_i32, %c0_i32_0 : i32, i32
  }
  func.func @transform_3(%arg0: i32) -> (i32, i32) {
    %c0_i32 = arith.constant 0 : i32
    %c0_i32_0 = arith.constant 0 : i32
    %c0_i32_1 = arith.constant 0 : i32
    return %c0_i32, %c0_i32_0 : i32, i32
  }
  func.func @transform_4(%arg0: i32) -> (i32, i32, i32) {
    %c0_i32 = arith.constant 0 : i32
    %c0_i32_0 = arith.constant 0 : i32
    %c0_i32_1 = arith.constant 0 : i32
    %c0_i32_2 = arith.constant 0 : i32
    return %c0_i32, %c0_i32_0, %c0_i32_1 : i32, i32, i32
  }
  func.func @transform_5(%arg0: i32) -> (i32, i32, i32) {
    %c0_i32 = arith.constant 0 : i32
    %c0_i32_0 = arith.constant 0 : i32
    %c0_i32_1 = arith.constant 0 : i32
    %c0_i32_2 = arith.constant 0 : i32
    return %c0_i32, %c0_i32_0, %c0_i32_1 : i32, i32, i32
  }
  func.func @transform_6(%arg0: i32) -> (i32, i32, i32) {
    %c0_i32 = arith.constant 0 : i32
    %c0_i32_0 = arith.constant 0 : i32
    %c0_i32_1 = arith.constant 0 : i32
    %c0_i32_2 = arith.constant 0 : i32
    return %c0_i32, %c0_i32_0, %c0_i32_1 : i32, i32, i32
  }
  func.func @transform_7(%arg0: i32) -> (i32, i32, i32) {
    %c0_i32 = arith.constant 0 : i32
    %c0_i32_0 = arith.constant 0 : i32
    %c0_i32_1 = arith.constant 0 : i32
    %c0_i32_2 = arith.constant 0 : i32
    return %c0_i32, %c0_i32_0, %c0_i32_1 : i32, i32, i32
  }
  func.func @transform_8(%arg0: i32) -> (i32, i32, i32) {
    %c0_i32 = arith.constant 0 : i32
    %c0_i32_0 = arith.constant 0 : i32
    %c0_i32_1 = arith.constant 0 : i32
    %c0_i32_2 = arith.constant 0 : i32
    return %c0_i32, %c0_i32_0, %c0_i32_1 : i32, i32, i32
  }
  func.func @transform_9(%arg0: i32) -> (i32, i32, i32) {
    %c0_i32 = arith.constant 0 : i32
    %c0_i32_0 = arith.constant 0 : i32
    %c0_i32_1 = arith.constant 0 : i32
    %c0_i32_2 = arith.constant 0 : i32
    return %c0_i32, %c0_i32_0, %c0_i32_1 : i32, i32, i32
  }
  func.func @transform_10(%arg0: i32) -> (i32, i32, i32) {
    %c0_i32 = arith.constant 0 : i32
    %c0_i32_0 = arith.constant 0 : i32
    %c0_i32_1 = arith.constant 0 : i32
    %c0_i32_2 = arith.constant 0 : i32
    return %c0_i32, %c0_i32_0, %c0_i32_1 : i32, i32, i32
  }
  func.func @transform_11(%arg0: i32) -> (i32, i32, i32) {
    %c0_i32 = arith.constant 0 : i32
    %c0_i32_0 = arith.constant 0 : i32
    %c0_i32_1 = arith.constant 0 : i32
    %c0_i32_2 = arith.constant 0 : i32
    return %c0_i32, %c0_i32_0, %c0_i32_1 : i32, i32, i32
  }
  func.func @transform_12(%arg0: i32) -> (i32, i32, i32) {
    %c0_i32 = arith.constant 0 : i32
    %c0_i32_0 = arith.constant 0 : i32
    %c0_i32_1 = arith.constant 0 : i32
    %c0_i32_2 = arith.constant 0 : i32
    return %c0_i32, %c0_i32_0, %c0_i32_1 : i32, i32, i32
  }
  func.func @transform_13(%arg0: i32) -> (i32, i32, i32) {
    %c0_i32 = arith.constant 0 : i32
    %c0_i32_0 = arith.constant 0 : i32
    %c0_i32_1 = arith.constant 0 : i32
    %c0_i32_2 = arith.constant 0 : i32
    return %c0_i32, %c0_i32_0, %c0_i32_1 : i32, i32, i32
  }
  func.func @transform_14(%arg0: i32) -> (i32, i32, i32) {
    %c0_i32 = arith.constant 0 : i32
    %c0_i32_0 = arith.constant 0 : i32
    %c0_i32_1 = arith.constant 0 : i32
    %c0_i32_2 = arith.constant 0 : i32
    return %c0_i32, %c0_i32_0, %c0_i32_1 : i32, i32, i32
  }
  func.func @transform_15(%arg0: i32) -> (i32, i32, i32) {
    %c0_i32 = arith.constant 0 : i32
    %c0_i32_0 = arith.constant 0 : i32
    %c0_i32_1 = arith.constant 0 : i32
    %c0_i32_2 = arith.constant 0 : i32
    return %c0_i32, %c0_i32_0, %c0_i32_1 : i32, i32, i32
  }
  func.func @transform_16(%arg0: i32) -> (i32, i32) {
    %c0_i32 = arith.constant 0 : i32
    %c0_i32_0 = arith.constant 0 : i32
    %c0_i32_1 = arith.constant 0 : i32
    return %c0_i32, %c0_i32_0 : i32, i32
  }
}

</mosaic_0001>

<llo_original>
// kernel: _lambda_.1
$region0: #{_lambda_.1}
  #allocation0 [shape = 'u32[]', space=smem, size = 0x4, offset = 0x4, fixed_abs, tag = 'smem constant byte address 0x4 - core index']
  #allocation1 [shape = 'u32[72,128]{1,0:T(1,128)}', space=vmem, size = 0x9000, scoped, tag = 'internal scratch']
  %s0 = inlined_call_operand.vmem [shape: f32[16,32], index: 0, kind: input, shape index: {}]
  %s1 = inlined_call_operand.vmem [shape: f32[2,1,8], index: 1, kind: input, shape index: {}]
  %s2 = inlined_call_operand.vmem [shape: f32[1,32], index: 2, kind: input, shape index: {}]
  %s3 = inlined_call_operand.vmem [shape: f32[1,32], index: 3, kind: input, shape index: {}]
  %s4 = inlined_call_operand.vmem [shape: bf16[2,32,96], index: 4, kind: input, shape index: {}]
  %s5 = inlined_call_operand.vmem [shape: f32[2,1,96], index: 5, kind: input, shape index: {}]
  %s6 = inlined_call_operand.vmem [shape: bf16[2,32,32], index: 6, kind: input, shape index: {}]
  %s7 = inlined_call_operand.vmem [shape: f32[2,1,32], index: 7, kind: input, shape index: {}, may-alias: {7,9,13,15}]
  %s8 = inlined_call_operand.vmem [shape: f32[2,1,32], index: 8, kind: input, shape index: {}, may-alias: {8,14}]
  %s9 = inlined_call_operand.vmem [shape: f32[2,1,32], index: 9, kind: input, shape index: {}, may-alias: {7,9,13,15}]
  %s10 = inlined_call_operand.vmem [shape: bf16[2,32,64], index: 10, kind: input, shape index: {}]
  %s11 = inlined_call_operand.vmem [shape: f32[2,1,64], index: 11, kind: input, shape index: {}]
  %s12 = inlined_call_operand.vmem [shape: bf16[2,64,32], index: 12, kind: input, shape index: {}]
  %s13 = inlined_call_operand.vmem [shape: f32[2,1,32], index: 13, kind: input, shape index: {}, may-alias: {7,9,13,15}]
  %s14 = inlined_call_operand.vmem [shape: f32[2,1,32], index: 14, kind: input, shape index: {}, may-alias: {8,14}]
  %s15 = inlined_call_operand.vmem [shape: f32[2,1,32], index: 15, kind: input, shape index: {}, may-alias: {7,9,13,15}]
  %s16 = inlined_call_operand.hbm [shape: f32[2,32], index: 16, kind: output, shape index: {}]
  %s17 = sld [smem:[#allocation0]]
  $region74: #{_lambda_.1} parent=0
    _
  %s19 = ssub.s32 1, %s17
  %s20 = scalar_select 0, %s19, %s17
  $region1: #{_lambda_.1} parent=0
    #allocation2 [shape = 'u8[1024]{0}', space=vmem, size = 0x400, scoped, tag = 'output window, operand 0, single buffered']
    #allocation3 [shape = 's32[1]{0}', space=sflag, size = 0x4, scoped, tag = 'scoped memory for _lambda_.1']
    %21 = vsyncpa [#allocation3], 0
    // Predicated region
    $region2: #{_lambda_.1} parent=1 // pred_check
      _
    $region3: #{_lambda_.1} parent=1 // pred_check_branch
      %23 = sbr.rel (0) target = $region5
    $region4: #{_lambda_.1} parent=1 // pred_region
      _
    $region5: #{_lambda_.1} parent=1 // pred_fallthru
      _
    // Predicated region
    $region6: #{_lambda_.1} parent=1 // pred_check
      _
    $region7: #{_lambda_.1} parent=1 // pred_check_branch
      %25 = sbr.rel (0) target = $region9
    $region8: #{_lambda_.1} parent=1 // pred_region
      _
    $region9: #{_lambda_.1} parent=1 // pred_fallthru
      _
    // Predicated region
    $region10: #{_lambda_.1} parent=1 // pred_check
      _
    $region11: #{_lambda_.1} parent=1 // pred_check_branch
      %27 = sbr.rel (0) target = $region13
    $region12: #{_lambda_.1} parent=1 // pred_region
      _
    $region13: #{_lambda_.1} parent=1 // pred_fallthru
      _
    // Predicated region
    $region14: #{_lambda_.1} parent=1 // pred_check
      _
    $region15: #{_lambda_.1} parent=1 // pred_check_branch
      %29 = sbr.rel (0) target = $region17
    $region16: #{_lambda_.1} parent=1 // pred_region
      _
    $region17: #{_lambda_.1} parent=1 // pred_fallthru
      _
    // Predicated region
    $region18: #{_lambda_.1} parent=1 // pred_check
      _
    $region19: #{_lambda_.1} parent=1 // pred_check_branch
      %31 = sbr.rel (0) target = $region21
    $region20: #{_lambda_.1} parent=1 // pred_region
      _
    $region21: #{_lambda_.1} parent=1 // pred_fallthru
      _
    // Predicated region
    $region22: #{_lambda_.1} parent=1 // pred_check
      _
    $region23: #{_lambda_.1} parent=1 // pred_check_branch
      %33 = sbr.rel (0) target = $region25
    $region24: #{_lambda_.1} parent=1 // pred_region
      _
    $region25: #{_lambda_.1} parent=1 // pred_fallthru
      _
    // Predicated region
    $region26: #{_lambda_.1} parent=1 // pred_check
      _
    $region27: #{_lambda_.1} parent=1 // pred_check_branch
      %35 = sbr.rel (0) target = $region29
    $region28: #{_lambda_.1} parent=1 // pred_region
      _
    $region29: #{_lambda_.1} parent=1 // pred_fallthru
      _
    // Predicated region
    $region30: #{_lambda_.1} parent=1 // pred_check
      _
    $region31: #{_lambda_.1} parent=1 // pred_check_branch
      %37 = sbr.rel (0) target = $region33
    $region32: #{_lambda_.1} parent=1 // pred_region
      _
    $region33: #{_lambda_.1} parent=1 // pred_fallthru
      _
    // Predicated region
    $region34: #{_lambda_.1} parent=1 // pred_check
      _
    $region35: #{_lambda_.1} parent=1 // pred_check_branch
      %39 = sbr.rel (0) target = $region37
    $region36: #{_lambda_.1} parent=1 // pred_region
      _
    $region37: #{_lambda_.1} parent=1 // pred_fallthru
      _
    // Predicated region
    $region38: #{_lambda_.1} parent=1 // pred_check
      _
    $region39: #{_lambda_.1} parent=1 // pred_check_branch
      %41 = sbr.rel (0) target = $region41
    $region40: #{_lambda_.1} parent=1 // pred_region
      _
    $region41: #{_lambda_.1} parent=1 // pred_fallthru
      _
    // Predicated region
    $region42: #{_lambda_.1} parent=1 // pred_check
      _
    $region43: #{_lambda_.1} parent=1 // pred_check_branch
      %43 = sbr.rel (0) target = $region45
    $region44: #{_lambda_.1} parent=1 // pred_region
      _
    $region45: #{_lambda_.1} parent=1 // pred_fallthru
      _
    // Predicated region
    $region46: #{_lambda_.1} parent=1 // pred_check
      _
    $region47: #{_lambda_.1} parent=1 // pred_check_branch
      %45 = sbr.rel (0) target = $region49
    $region48: #{_lambda_.1} parent=1 // pred_region
      _
    $region49: #{_lambda_.1} parent=1 // pred_fallthru
      _
    // Predicated region
    $region50: #{_lambda_.1} parent=1 // pred_check
      _
    $region51: #{_lambda_.1} parent=1 // pred_check_branch
      %47 = sbr.rel (0) target = $region53
    $region52: #{_lambda_.1} parent=1 // pred_region
      _
    $region53: #{_lambda_.1} parent=1 // pred_fallthru
      _
    // Predicated region
    $region54: #{_lambda_.1} parent=1 // pred_check
      _
    $region55: #{_lambda_.1} parent=1 // pred_check_branch
      %49 = sbr.rel (0) target = $region57
    $region56: #{_lambda_.1} parent=1 // pred_region
      _
    $region57: #{_lambda_.1} parent=1 // pred_fallthru
      _
    // Predicated region
    $region58: #{_lambda_.1} parent=1 // pred_check
      _
    $region59: #{_lambda_.1} parent=1 // pred_check_branch
      %51 = sbr.rel (0) target = $region61
    $region60: #{_lambda_.1} parent=1 // pred_region
      _
    $region61: #{_lambda_.1} parent=1 // pred_fallthru
      _
    // Predicated region
    $region62: #{_lambda_.1} parent=1 // pred_check
      _
    $region63: #{_lambda_.1} parent=1 // pred_check_branch
      %53 = sbr.rel (0) target = $region65
    $region64: #{_lambda_.1} parent=1 // pred_region
      _
    $region65: #{_lambda_.1} parent=1 // pred_fallthru
      _
    %v55 = vld [vmem:[%s1] sm:$0x1]
    %v56 = vld [vmem:[%s1 + $0x1] sm:$0x1]
    %v59 = vperm.slane %v55, 0
    %v60 = vperm.slane %v56, 0
    %v63 = vld [vmem:[%s0] sm:$0xff]
    %v64 = vld [vmem:[%s0 + $0x8] sm:$0xff]
    %v65 = vld [vmem:[%s2] sm:$0x1]
    %v66 = vld [vmem:[%s3] sm:$0x1]
    %vm67 = vcmask 261120
    %v68 = vsel %vm67, %v63, 0.0
    %69 = vadd.xlane.f32.xlu0 %v68
    %v70 = vpop.xlane.xlu0 %69
    %v71 = vsel %vm67, %v64, 0.0
    %72 = vadd.xlane.f32.xlu0 %v71
    %v73 = vpop.xlane.xlu0 %72
    %v74 = vmul.f32 %v63, %v63
    %v75 = vmul.f32 %v64, %v64
    %v76 = vsel %vm67, %v74, 0.0
    %77 = vadd.xlane.f32.xlu0 %v76
    %v78 = vpop.xlane.xlu0 %77
    %v79 = vsel %vm67, %v75, 0.0
    %80 = vadd.xlane.f32.xlu0 %v79
    %v81 = vpop.xlane.xlu0 %80
    %v82 = vmul.f32 %v70, 0.03125
    %v83 = vmul.f32 %v73, 0.03125
    %v84 = vmul.f32 %v78, 0.03125
    %v85 = vmul.f32 %v81, 0.03125
    %v86 = vmul.f32 %v82, %v82
    %v87 = vmul.f32 %v83, %v83
    %v88 = vsub.f32 %v84, %v86
    %v89 = vsub.f32 %v85, %v87
    %v90 = vsub.f32 %v63, %v82
    %v91 = vsub.f32 %v64, %v83
    %v92 = vadd.f32 %v88, 1e-12
    %v93 = vadd.f32 %v89, 1e-12
    %v94 = vrsqrt.pop %v92
    %v95 = vmul.f32 %v94, %v92
    %v96 = vmul.f32 %v95, %v94
    %v97 = vmul.f32 0.5, %v96
    %v98 = vsub.f32 1.5, %v97
    %v99 = vmul.f32 %v94, %v98
    %vm100 = vweird.f32 %v92
    %vm101 = vweird.f32 %v94
    %vm102 = vmor %vm100, %vm101
    %v103 = vsel %vm102, %v94, %v99
    %v104 = vrsqrt.pop %v93
    %v105 = vmul.f32 %v104, %v93
    %v106 = vmul.f32 %v105, %v104
    %v107 = vmul.f32 0.5, %v106
    %v108 = vsub.f32 1.5, %v107
    %v109 = vmul.f32 %v104, %v108
    %vm110 = vweird.f32 %v93
    %vm111 = vweird.f32 %v104
    %vm112 = vmor %vm110, %vm111
    %v113 = vsel %vm112, %v104, %v109
    %v114 = vmul.f32 %v90, %v103
    %v115 = vmul.f32 %v91, %v113
    %v117 = vperm.slane %v65, 0
    %v119 = vmul.f32 %v114, %v117
    %v120 = vmul.f32 %v115, %v117
    %v122 = vperm.slane %v66, 0
    %v124 = vadd.f32 %v119, %v122
    %v125 = vadd.f32 %v120, %v122
    %v126 = vpack.c.bf16 %v125, %v124
    %v127 = vld [vmem:[%s4] sm:$0xf]
    %v128 = vld [vmem:[%s4 + $0x4] sm:$0xf]
    %v129 = vld [vmem:[%s4 + $0x8] sm:$0xf]
    %v130 = vld [vmem:[%s4 + $0xc] sm:$0xf]
    %v131 = vld [vmem:[%s5] sm:$0x1]
    %v133 = vperm.slane %v131, 0
    %v139 = vunpack.c.l.b16 %v127
    %v140 = vunpack.c.l.b16 %v128
    %v141 = vunpack.c.l.b16 %v129
    %v142 = vunpack.c.l.b16 %v130
    %v143 = vpack.c.b16 %v140, %v139
    %v144 = vpack.c.b16 %v142, %v141
    %v148 = vsel %vm67, %v126, 0
    %150 = vmatpush.bf16.msra.mxu0 0
    %151 = vmatpush.bf16.msra.mxu0 0
    %152 = vmatpush.bf16.msra.mxu0 0
    %153 = vmatpush.bf16.msra.mxu0 0
    %154 = vmatpush.bf16.msra.mxu0 0
    %155 = vmatpush.bf16.msra.mxu0 0
    %156 = vmatpush.bf16.msra.mxu0 %v144
    %157 = vmatpush.bf16.msra.mxu0 %v143
    %158 = vmatmul.bf16.gmra.mxu0 %v148
    %v159 = vpop.f32.mrf.mxu0
    %v160 = vadd.f32 %v133, %v159
    %v161 = vpop.f32.mrf.mxu0
    %v162 = vadd.f32 %v133, %v161
    %163 = vdwg.mxu0
    %v164 = vmul.f32 %v160, 0.25
    %v165 = vmul.f32 %v162, 0.25
    %v166 = vld [vmem:[%s7] sm:$0x1]
    %v168 = vperm.slane %v166, 0
    %v170 = vpack.c.bf16 %v164, %v164
    %v171 = vpack.c.bf16 %v165, %v165
    %v172 = vpack.c.bf16 %v160, %v160
    %v173 = vpack.c.bf16 %v162, %v162
    %v175 = vunpack.c.l.b16 %v172
    %v176 = vpack.c.b16 %v175, %v175
    %177 = vrot.lane.b32.xlu0 %v176, 96
    %v178 = vpop.permute.xlu0 %177
    %vm179 = vcmask 130048
    %v181 = vsel %vm179, %v170, 0
    %v184 = vsel %vm179, %v178, 0
    %186 = vmatpush.bf16.xpose.msra.mxu0 0
    %187 = vmatpush.bf16.xpose.msra.mxu0 0
    %188 = vmatpush.bf16.xpose.msra.mxu0 0
    %189 = vmatpush.bf16.xpose.msra.mxu0 0
    %190 = vmatpush.bf16.xpose.msra.mxu0 0
    %191 = vmatpush.bf16.xpose.msra.mxu0 0
    %192 = vmatpush.bf16.xpose.msra.mxu0 0
    %193 = vmatpush.bf16.xpose.msra.mxu0 %v184
    %194 = vmatmul.bf16.gmra.mxu0 %v181
    %v195 = vpop.f32.mrf.mxu0
    %v196 = vadd.f32 %v59, %v195
    %v197 = vpop.f32.mrf.mxu0
    %198 = vdwg.mxu0
    %v200 = vunpack.c.l.b16 %v173
    %v201 = vpack.c.b16 %v200, %v200
    %202 = vrot.lane.b32.xlu0 %v201, 96
    %v203 = vpop.permute.xlu0 %202
    %v205 = vsel %vm179, %v171, 0
    %v208 = vsel %vm179, %v203, 0
    %210 = vmatpush.bf16.xpose.msra.mxu0 0
    %211 = vmatpush.bf16.xpose.msra.mxu0 0
    %212 = vmatpush.bf16.xpose.msra.mxu0 0
    %213 = vmatpush.bf16.xpose.msra.mxu0 0
    %214 = vmatpush.bf16.xpose.msra.mxu0 0
    %215 = vmatpush.bf16.xpose.msra.mxu0 0
    %216 = vmatpush.bf16.xpose.msra.mxu0 0
    %217 = vmatpush.bf16.xpose.msra.mxu0 %v208
    %218 = vmatmul.bf16.gmra.mxu0 %v205
    %v219 = vpop.f32.mrf.mxu0
    %v220 = vadd.f32 %v60, %v219
    %v221 = vpop.f32.mrf.mxu0
    %222 = vdwg.mxu0
    %vm223 = vcmask 64512
    %v224 = vsel %vm223, %v196, -inf
    %225 = vmax.xlane.f32.xlu0 %v224
    %v226 = vpop.xlane.xlu0 %225
    %v227 = vsel %vm223, %v220, -inf
    %228 = vmax.xlane.f32.xlu0 %v227
    %v229 = vpop.xlane.xlu0 %228
    %v230 = vsub.f32 %v196, %v226
    %v231 = vsub.f32 %v220, %v229
    %v232 = vmul.f32 %v230, 1.442695
    %v233 = vpow.pop %v232
    %v234 = vmul.f32 %v231, 1.442695
    %v235 = vpow.pop %v234
    %v236 = vsel %vm223, %v233, 0.0
    %237 = vadd.xlane.f32.xlu0 %v236
    %v238 = vpop.xlane.xlu0 %237
    %v239 = vsel %vm223, %v235, 0.0
    %240 = vadd.xlane.f32.xlu0 %v239
    %v241 = vpop.xlane.xlu0 %240
    %v242 = vrcp.pop %v238
    %v243 = vrcp.pop %v241
    %v244 = vmul.f32 %v233, %v242
    %v245 = vmul.f32 %v235, %v243
    %v246 = vpack.c.bf16 %v244, %v244
    %v247 = vpack.c.bf16 %v245, %v245
    %248 = vrot.lane.b32.xlu0 %v176, 64
    %v249 = vpop.permute.xlu0 %248
    %v251 = vsel %vm223, %v246, 0
    %vm253 = vcmask 1043456
    %v255 = vsel %vm253, %v249, 0
    %257 = vmatpush.bf16.msra.mxu0 0
    %258 = vmatpush.bf16.msra.mxu0 0
    %259 = vmatpush.bf16.msra.mxu0 0
    %260 = vmatpush.bf16.msra.mxu0 0
    %261 = vmatpush.bf16.msra.mxu0 0
    %262 = vmatpush.bf16.msra.mxu0 0
    %263 = vmatpush.bf16.msra.mxu0 0
    %264 = vmatpush.bf16.msra.mxu0 %v255
    %265 = vmatmul.bf16.gmra.mxu0 %v251
    %v266 = vpop.f32.mrf.mxu0
    %v267 = vadd.f32 0.0, %v266
    %v268 = vpop.f32.mrf.mxu0
    %269 = vdwg.mxu0
    %270 = vrot.lane.b32.xlu0 %v201, 64
    %v271 = vpop.permute.xlu0 %270
    %v273 = vsel %vm223, %v247, 0
    %v276 = vsel %vm253, %v271, 0
    %278 = vmatpush.bf16.msra.mxu0 0
    %279 = vmatpush.bf16.msra.mxu0 0
    %280 = vmatpush.bf16.msra.mxu0 0
    %281 = vmatpush.bf16.msra.mxu0 0
    %282 = vmatpush.bf16.msra.mxu0 0
    %283 = vmatpush.bf16.msra.mxu0 0
    %284 = vmatpush.bf16.msra.mxu0 0
    %285 = vmatpush.bf16.msra.mxu0 %v276
    %286 = vmatmul.bf16.gmra.mxu0 %v273
    %v287 = vpop.f32.mrf.mxu0
    %v288 = vadd.f32 0.0, %v287
    %v289 = vpop.f32.mrf.mxu0
    %290 = vdwg.mxu0
    %v291 = vpack.c.bf16 %v288, %v267
    %v292 = vld [vmem:[%s6] sm:$0xf]
    %v293 = vld [vmem:[%s6 + $0x4] sm:$0xf]
    %v296 = vunpack.c.l.b16 %v292
    %v297 = vunpack.c.l.b16 %v293
    %v298 = vpack.c.b16 %v297, %v296
    %v301 = vsel %vm179, %v291, 0
    %303 = vmatpush.bf16.msra.mxu0 0
    %304 = vmatpush.bf16.msra.mxu0 0
    %305 = vmatpush.bf16.msra.mxu0 0
    %306 = vmatpush.bf16.msra.mxu0 0
    %307 = vmatpush.bf16.msra.mxu0 0
    %308 = vmatpush.bf16.msra.mxu0 0
    %309 = vmatpush.bf16.msra.mxu0 0
    %310 = vmatpush.bf16.msra.mxu0 %v298
    %311 = vmatmul.bf16.gmra.mxu0 %v301
    %v312 = vpop.f32.mrf.mxu0
    %v313 = vadd.f32 0.0, %v312
    %v314 = vpop.f32.mrf.mxu0
    %v315 = vadd.f32 0.0, %v314
    %316 = vdwg.mxu0
    %v317 = vadd.f32 %v168, %v313
    %v318 = vadd.f32 %v168, %v315
    %v320 = vunpack.c.l.b16 %v170
    %v321 = vpack.c.b16 %v320, %v320
    %322 = vrot.lane.b32.xlu0 %v321, 112
    %v323 = vpop.permute.xlu0 %322
    %324 = vrot.lane.b32.xlu0 %v176, 80
    %v325 = vpop.permute.xlu0 %324
    %v327 = vsel %vm179, %v323, 0
    %v330 = vsel %vm179, %v325, 0
    %332 = vmatpush.bf16.xpose.msra.mxu0 0
    %333 = vmatpush.bf16.xpose.msra.mxu0 0
    %334 = vmatpush.bf16.xpose.msra.mxu0 0
    %335 = vmatpush.bf16.xpose.msra.mxu0 0
    %336 = vmatpush.bf16.xpose.msra.mxu0 0
    %337 = vmatpush.bf16.xpose.msra.mxu0 0
    %338 = vmatpush.bf16.xpose.msra.mxu0 0
    %339 = vmatpush.bf16.xpose.msra.mxu0 %v330
    %340 = vmatmul.bf16.gmra.mxu0 %v327
    %v341 = vpop.f32.mrf.mxu0
    %v342 = vadd.f32 %v59, %v341
    %v343 = vpop.f32.mrf.mxu0
    %344 = vdwg.mxu0
    %v346 = vunpack.c.l.b16 %v171
    %v347 = vpack.c.b16 %v346, %v346
    %348 = vrot.lane.b32.xlu0 %v347, 112
    %v349 = vpop.permute.xlu0 %348
    %350 = vrot.lane.b32.xlu0 %v201, 80
    %v351 = vpop.permute.xlu0 %350
    %v353 = vsel %vm179, %v349, 0
    %v356 = vsel %vm179, %v351, 0
    %358 = vmatpush.bf16.xpose.msra.mxu0 0
    %359 = vmatpush.bf16.xpose.msra.mxu0 0
    %360 = vmatpush.bf16.xpose.msra.mxu0 0
    %361 = vmatpush.bf16.xpose.msra.mxu0 0
    %362 = vmatpush.bf16.xpose.msra.mxu0 0
    %363 = vmatpush.bf16.xpose.msra.mxu0 0
    %364 = vmatpush.bf16.xpose.msra.mxu0 0
    %365 = vmatpush.bf16.xpose.msra.mxu0 %v356
    %366 = vmatmul.bf16.gmra.mxu0 %v353
    %v367 = vpop.f32.mrf.mxu0
    %v368 = vadd.f32 %v60, %v367
    %v369 = vpop.f32.mrf.mxu0
    %370 = vdwg.mxu0
    %v371 = vsel %vm223, %v342, -inf
    %372 = vmax.xlane.f32.xlu0 %v371
    %v373 = vpop.xlane.xlu0 %372
    %v374 = vsel %vm223, %v368, -inf
    %375 = vmax.xlane.f32.xlu0 %v374
    %v376 = vpop.xlane.xlu0 %375
    %v377 = vsub.f32 %v342, %v373
    %v378 = vsub.f32 %v368, %v376
    %v379 = vmul.f32 %v377, 1.442695
    %v380 = vpow.pop %v379
    %v381 = vmul.f32 %v378, 1.442695
    %v382 = vpow.pop %v381
    %v383 = vsel %vm223, %v380, 0.0
    %384 = vadd.xlane.f32.xlu0 %v383
    %v385 = vpop.xlane.xlu0 %384
    %v386 = vsel %vm223, %v382, 0.0
    %387 = vadd.xlane.f32.xlu0 %v386
    %v388 = vpop.xlane.xlu0 %387
    %v389 = vrcp.pop %v385
    %v390 = vrcp.pop %v388
    %v391 = vmul.f32 %v380, %v389
    %v392 = vmul.f32 %v382, %v390
    %v393 = vpack.c.bf16 %v391, %v391
    %v394 = vpack.c.bf16 %v392, %v392
    %395 = vrot.lane.b32.xlu0 %v176, 48
    %v396 = vpop.permute.xlu0 %395
    %v398 = vsel %vm223, %v393, 0
    %v401 = vsel %vm253, %v396, 0
    %403 = vmatpush.bf16.msra.mxu0 0
    %404 = vmatpush.bf16.msra.mxu0 0
    %405 = vmatpush.bf16.msra.mxu0 0
    %406 = vmatpush.bf16.msra.mxu0 0
    %407 = vmatpush.bf16.msra.mxu0 0
    %408 = vmatpush.bf16.msra.mxu0 0
    %409 = vmatpush.bf16.msra.mxu0 0
    %410 = vmatpush.bf16.msra.mxu0 %v401
    %411 = vmatmul.bf16.gmra.mxu0 %v398
    %v412 = vpop.f32.mrf.mxu0
    %v413 = vadd.f32 0.0, %v412
    %v414 = vpop.f32.mrf.mxu0
    %415 = vdwg.mxu0
    %416 = vrot.lane.b32.xlu0 %v201, 48
    %v417 = vpop.permute.xlu0 %416
    %v419 = vsel %vm223, %v394, 0
    %v422 = vsel %vm253, %v417, 0
    %424 = vmatpush.bf16.msra.mxu0 0
    %425 = vmatpush.bf16.msra.mxu0 0
    %426 = vmatpush.bf16.msra.mxu0 0
    %427 = vmatpush.bf16.msra.mxu0 0
    %428 = vmatpush.bf16.msra.mxu0 0
    %429 = vmatpush.bf16.msra.mxu0 0
    %430 = vmatpush.bf16.msra.mxu0 0
    %431 = vmatpush.bf16.msra.mxu0 %v422
    %432 = vmatmul.bf16.gmra.mxu0 %v419
    %v433 = vpop.f32.mrf.mxu0
    %v434 = vadd.f32 0.0, %v433
    %v435 = vpop.f32.mrf.mxu0
    %436 = vdwg.mxu0
    %v437 = vpack.c.bf16 %v434, %v413
    %v438 = vld [vmem:[%s6 + $0x8] sm:$0xf]
    %v439 = vld [vmem:[%s6 + $0xc] sm:$0xf]
    %v442 = vunpack.c.l.b16 %v438
    %v443 = vunpack.c.l.b16 %v439
    %v444 = vpack.c.b16 %v443, %v442
    %v447 = vsel %vm179, %v437, 0
    %449 = vmatpush.bf16.msra.mxu0 0
    %450 = vmatpush.bf16.msra.mxu0 0
    %451 = vmatpush.bf16.msra.mxu0 0
    %452 = vmatpush.bf16.msra.mxu0 0
    %453 = vmatpush.bf16.msra.mxu0 0
    %454 = vmatpush.bf16.msra.mxu0 0
    %455 = vmatpush.bf16.msra.mxu0 0
    %456 = vmatpush.bf16.msra.mxu0 %v444
    %457 = vmatmul.bf16.gmra.mxu0 %v447
    %v458 = vpop.f32.mrf.mxu0
    %v459 = vadd.f32 0.0, %v458
    %v460 = vpop.f32.mrf.mxu0
    %v461 = vadd.f32 0.0, %v460
    %462 = vdwg.mxu0
    %v463 = vadd.f32 %v317, %v459
    %v464 = vadd.f32 %v318, %v461
    %v465 = vadd.f32 %v463, %v124
    %v466 = vadd.f32 %v464, %v125
    %v467 = vld [vmem:[%s8] sm:$0x1]
    %v468 = vld [vmem:[%s9] sm:$0x1]
    %v469 = vsel %vm67, %v465, 0.0
    %470 = vadd.xlane.f32.xlu0 %v469
    %v471 = vpop.xlane.xlu0 %470
    %v472 = vsel %vm67, %v466, 0.0
    %473 = vadd.xlane.f32.xlu0 %v472
    %v474 = vpop.xlane.xlu0 %473
    %v475 = vmul.f32 %v465, %v465
    %v476 = vmul.f32 %v466, %v466
    %v477 = vsel %vm67, %v475, 0.0
    %478 = vadd.xlane.f32.xlu0 %v477
    %v479 = vpop.xlane.xlu0 %478
    %v480 = vsel %vm67, %v476, 0.0
    %481 = vadd.xlane.f32.xlu0 %v480
    %v482 = vpop.xlane.xlu0 %481
    %v483 = vmul.f32 %v471, 0.03125
    %v484 = vmul.f32 %v474, 0.03125
    %v485 = vmul.f32 %v479, 0.03125
    %v486 = vmul.f32 %v482, 0.03125
    %v487 = vmul.f32 %v483, %v483
    %v488 = vmul.f32 %v484, %v484
    %v489 = vsub.f32 %v485, %v487
    %v490 = vsub.f32 %v486, %v488
    %v491 = vsub.f32 %v465, %v483
    %v492 = vsub.f32 %v466, %v484
    %v493 = vadd.f32 %v489, 1e-12
    %v494 = vadd.f32 %v490, 1e-12
    %v495 = vrsqrt.pop %v493
    %v496 = vmul.f32 %v495, %v493
    %v497 = vmul.f32 %v496, %v495
    %v498 = vmul.f32 0.5, %v497
    %v499 = vsub.f32 1.5, %v498
    %v500 = vmul.f32 %v495, %v499
    %vm501 = vweird.f32 %v493
    %vm502 = vweird.f32 %v495
    %vm503 = vmor %vm501, %vm502
    %v504 = vsel %vm503, %v495, %v500
    %v505 = vrsqrt.pop %v494
    %v506 = vmul.f32 %v505, %v494
    %v507 = vmul.f32 %v506, %v505
    %v508 = vmul.f32 0.5, %v507
    %v509 = vsub.f32 1.5, %v508
    %v510 = vmul.f32 %v505, %v509
    %vm511 = vweird.f32 %v494
    %vm512 = vweird.f32 %v505
    %vm513 = vmor %vm511, %vm512
    %v514 = vsel %vm513, %v505, %v510
    %v515 = vmul.f32 %v491, %v504
    %v516 = vmul.f32 %v492, %v514
    %v518 = vperm.slane %v467, 0
    %v520 = vmul.f32 %v515, %v518
    %v521 = vmul.f32 %v516, %v518
    %v523 = vperm.slane %v468, 0
    %v525 = vadd.f32 %v520, %v523
    %v526 = vadd.f32 %v521, %v523
    %v527 = vpack.c.bf16 %v526, %v525
    %v528 = vld [vmem:[%s10] sm:$0xf]
    %v529 = vld [vmem:[%s10 + $0x4] sm:$0xf]
    %v530 = vld [vmem:[%s10 + $0x8] sm:$0xf]
    %v531 = vld [vmem:[%s10 + $0xc] sm:$0xf]
    %v532 = vld [vmem:[%s11] sm:$0x1]
    %v534 = vperm.slane %v532, 0
    %v540 = vunpack.c.l.b16 %v528
    %v541 = vunpack.c.l.b16 %v529
    %v542 = vunpack.c.l.b16 %v530
    %v543 = vunpack.c.l.b16 %v531
    %v544 = vpack.c.b16 %v541, %v540
    %v545 = vpack.c.b16 %v543, %v542
    %v549 = vsel %vm67, %v527, 0
    %551 = vmatpush.bf16.msra.mxu0 0
    %552 = vmatpush.bf16.msra.mxu0 0
    %553 = vmatpush.bf16.msra.mxu0 0
    %554 = vmatpush.bf16.msra.mxu0 0
    %555 = vmatpush.bf16.msra.mxu0 0
    %556 = vmatpush.bf16.msra.mxu0 0
    %557 = vmatpush.bf16.msra.mxu0 %v545
    %558 = vmatpush.bf16.msra.mxu0 %v544
    %559 = vmatmul.bf16.gmra.mxu0 %v549
    %v560 = vpop.f32.mrf.mxu0
    %v561 = vadd.f32 %v534, %v560
    %v562 = vpop.f32.mrf.mxu0
    %v563 = vadd.f32 %v534, %v562
    %564 = vdwg.mxu0
    %v565 = vmul.f32 %v561, 0.5
    %v566 = vmul.f32 %v563, 0.5
    %v567 = vmul.f32 %v561, 0.70710677
    %v568 = vmul.f32 %v563, 0.70710677
    %v569 = vand.u32 2147483647, %v567
    %v570 = vand.u32 2147483647, %v568
    %v571 = vmul.f32 %v569, 0.3275911
    %v572 = vmul.f32 %v570, 0.3275911
    %v573 = vadd.f32 %v571, 1.0
    %v574 = vadd.f32 %v572, 1.0
    %v575 = vrcp.pop %v573
    %v576 = vmul.f32 %v573, %v575
    %v577 = vsub.f32 1.0, %v576
    %v578 = vmul.f32 %v575, %v577
    %v579 = vadd.f32 %v575, %v578
    %vm580 = vweird.f32 %v573
    %vm581 = vweird.f32 %v575
    %vm582 = vmor %vm580, %vm581
    %v583 = vsel %vm582, %v575, %v579
    %v584 = vand.u32 2147483647, %v573
    %vm585 = vcmp.eq.f32.partialorder %v584, 8.507059e+37
    %v586 = vand.u32 %v573, 2147483648
    %v587 = vor.u32 1.1754944e-38, %v586
    %v588 = vsel %vm585, %v587, %v583
    %v589 = vmul.f32 1.0, %v588
    %v590 = vrcp.pop %v574
    %v591 = vmul.f32 %v574, %v590
    %v592 = vsub.f32 1.0, %v591
    %v593 = vmul.f32 %v590, %v592
    %v594 = vadd.f32 %v590, %v593
    %vm595 = vweird.f32 %v574
    %vm596 = vweird.f32 %v590
    %vm597 = vmor %vm595, %vm596
    %v598 = vsel %vm597, %v590, %v594
    %v599 = vand.u32 2147483647, %v574
    %vm600 = vcmp.eq.f32.partialorder %v599, 8.507059e+37
    %v601 = vand.u32 %v574, 2147483648
    %v602 = vor.u32 1.1754944e-38, %v601
    %v603 = vsel %vm600, %v602, %v598
    %v604 = vmul.f32 1.0, %v603
    %v605 = vmul.f32 %v589, 1.0614054
    %v606 = vmul.f32 %v604, 1.0614054
    %v607 = vadd.f32 %v605, -1.4531521
    %v608 = vadd.f32 %v606, -1.4531521
    %v609 = vmul.f32 %v607, %v589
    %v610 = vmul.f32 %v608, %v604
    %v611 = vadd.f32 %v609, 1.4214138
    %v612 = vadd.f32 %v610, 1.4214138
    %v613 = vmul.f32 %v611, %v589
    %v614 = vmul.f32 %v612, %v604
    %v615 = vadd.f32 %v613, -0.28449672
    %v616 = vadd.f32 %v614, -0.28449672
    %v617 = vmul.f32 %v615, %v589
    %v618 = vmul.f32 %v616, %v604
    %v619 = vadd.f32 %v617, 0.2548296
    %v620 = vadd.f32 %v618, 0.2548296
    %v621 = vmul.f32 %v619, %v589
    %v622 = vmul.f32 %v620, %v604
    %v623 = vsub.f32 0.0, %v569
    %v624 = vsub.f32 0.0, %v570
    %v625 = vmul.f32 %v623, %v569
    %v626 = vmul.f32 %v624, %v570
    %v627 = vmul.f32 %v625, 1.442695
    %v628 = vpow.pop %v627
    %v629 = vmul.f32 %v626, 1.442695
    %v630 = vpow.pop %v629
    %v631 = vmul.f32 %v621, %v628
    %v632 = vmul.f32 %v622, %v630
    %v633 = vsub.f32 1.0, %v631
    %v634 = vsub.f32 1.0, %v632
    %vm635 = vcmp.ge.f32.partialorder %v567, 0.0
    %vm636 = vcmp.ge.f32.partialorder %v568, 0.0
    %v637 = vsub.f32 0.0, %v633
    %v638 = vsub.f32 0.0, %v634
    %v639 = vsel %vm635, %v633, %v637
    %v640 = vsel %vm636, %v634, %v638
    %v641 = vadd.f32 %v639, 1.0
    %v642 = vadd.f32 %v640, 1.0
    %v643 = vmul.f32 %v565, %v641
    %v644 = vmul.f32 %v566, %v642
    %v645 = vpack.c.bf16 %v644, %v643
    %v646 = vld [vmem:[%s12] sm:$0xf]
    %v647 = vld [vmem:[%s12 + $0x4] sm:$0xf]
    %v648 = vld [vmem:[%s12 + $0x8] sm:$0xf]
    %v649 = vld [vmem:[%s12 + $0xc] sm:$0xf]
    %v650 = vld [vmem:[%s12 + $0x10] sm:$0xf]
    %v651 = vld [vmem:[%s12 + $0x14] sm:$0xf]
    %v652 = vld [vmem:[%s12 + $0x18] sm:$0xf]
    %v653 = vld [vmem:[%s12 + $0x1c] sm:$0xf]
    %v654 = vld [vmem:[%s13] sm:$0x1]
    %v656 = vperm.slane %v654, 0
    %v666 = vunpack.c.l.b16 %v646
    %v667 = vunpack.c.l.b16 %v647
    %v668 = vunpack.c.l.b16 %v648
    %v669 = vunpack.c.l.b16 %v649
    %v670 = vunpack.c.l.b16 %v650
    %v671 = vunpack.c.l.b16 %v651
    %v672 = vunpack.c.l.b16 %v652
    %v673 = vunpack.c.l.b16 %v653
    %v674 = vpack.c.b16 %v667, %v666
    %v675 = vpack.c.b16 %v669, %v668
    %v676 = vpack.c.b16 %v671, %v670
    %v677 = vpack.c.b16 %v673, %v672
    %vm682 = vcmask 523264
    %v684 = vsel %vm682, %v645, 0
    %686 = vmatpush.bf16.msra.mxu0 0
    %687 = vmatpush.bf16.msra.mxu0 0
    %688 = vmatpush.bf16.msra.mxu0 0
    %689 = vmatpush.bf16.msra.mxu0 0
    %690 = vmatpush.bf16.msra.mxu0 %v677
    %691 = vmatpush.bf16.msra.mxu0 %v676
    %692 = vmatpush.bf16.msra.mxu0 %v675
    %693 = vmatpush.bf16.msra.mxu0 %v674
    %694 = vmatmul.bf16.gmra.mxu0 %v684
    %v695 = vpop.f32.mrf.mxu0
    %v696 = vadd.f32 %v656, %v695
    %v697 = vpop.f32.mrf.mxu0
    %v698 = vadd.f32 %v656, %v697
    %699 = vdwg.mxu0
    %v700 = vadd.f32 %v696, %v525
    %v701 = vadd.f32 %v698, %v526
    %v702 = vld [vmem:[%s14] sm:$0x1]
    %v703 = vld [vmem:[%s15] sm:$0x1]
    %v704 = vsel %vm67, %v700, 0.0
    %705 = vadd.xlane.f32.xlu0 %v704
    %v706 = vpop.xlane.xlu0 %705
    %v707 = vsel %vm67, %v701, 0.0
    %708 = vadd.xlane.f32.xlu0 %v707
    %v709 = vpop.xlane.xlu0 %708
    %v710 = vmul.f32 %v700, %v700
    %v711 = vmul.f32 %v701, %v701
    %v712 = vsel %vm67, %v710, 0.0
    %713 = vadd.xlane.f32.xlu0 %v712
    %v714 = vpop.xlane.xlu0 %713
    %v715 = vsel %vm67, %v711, 0.0
    %716 = vadd.xlane.f32.xlu0 %v715
    %v717 = vpop.xlane.xlu0 %716
    %v718 = vmul.f32 %v706, 0.03125
    %v719 = vmul.f32 %v709, 0.03125
    %v720 = vmul.f32 %v714, 0.03125
    %v721 = vmul.f32 %v717, 0.03125
    %v722 = vmul.f32 %v718, %v718
    %v723 = vmul.f32 %v719, %v719
    %v724 = vsub.f32 %v720, %v722
    %v725 = vsub.f32 %v721, %v723
    %v726 = vsub.f32 %v700, %v718
    %v727 = vsub.f32 %v701, %v719
    %v728 = vadd.f32 %v724, 1e-12
    %v729 = vadd.f32 %v725, 1e-12
    %v730 = vrsqrt.pop %v728
    %v731 = vmul.f32 %v730, %v728
    %v732 = vmul.f32 %v731, %v730
    %v733 = vmul.f32 0.5, %v732
    %v734 = vsub.f32 1.5, %v733
    %v735 = vmul.f32 %v730, %v734
    %vm736 = vweird.f32 %v728
    %vm737 = vweird.f32 %v730
    %vm738 = vmor %vm736, %vm737
    %v739 = vsel %vm738, %v730, %v735
    %v740 = vrsqrt.pop %v729
    %v741 = vmul.f32 %v740, %v729
    %v742 = vmul.f32 %v741, %v740
    %v743 = vmul.f32 0.5, %v742
    %v744 = vsub.f32 1.5, %v743
    %v745 = vmul.f32 %v740, %v744
    %vm746 = vweird.f32 %v729
    %vm747 = vweird.f32 %v740
    %vm748 = vmor %vm746, %vm747
    %v749 = vsel %vm748, %v740, %v745
    %v750 = vmul.f32 %v726, %v739
    %v751 = vmul.f32 %v727, %v749
    %v753 = vperm.slane %v702, 0
    %v755 = vmul.f32 %v750, %v753
    %v756 = vmul.f32 %v751, %v753
    %v758 = vperm.slane %v703, 0
    %v760 = vadd.f32 %v755, %v758
    %v761 = vadd.f32 %v756, %v758
    %v762 = vpack.c.bf16 %v761, %v760
    %s763 = scalar_lea.vmem %s4, 16
    %v764 = vld [vmem:[%s763] sm:$0xf]
    %v765 = vld [vmem:[%s763 + $0x4] sm:$0xf]
    %v766 = vld [vmem:[%s763 + $0x8] sm:$0xf]
    %v767 = vld [vmem:[%s763 + $0xc] sm:$0xf]
    %s768 = scalar_lea.vmem %s5, 1
    %v769 = vld [vmem:[%s768] sm:$0x1]
    %v771 = vperm.slane %v769, 0
    %v777 = vunpack.c.l.b16 %v764
    %v778 = vunpack.c.l.b16 %v765
    %v779 = vunpack.c.l.b16 %v766
    %v780 = vunpack.c.l.b16 %v767
    %v781 = vpack.c.b16 %v778, %v777
    %v782 = vpack.c.b16 %v780, %v779
    %v786 = vsel %vm67, %v762, 0
    %788 = vmatpush.bf16.msra.mxu0 0
    %789 = vmatpush.bf16.msra.mxu0 0
    %790 = vmatpush.bf16.msra.mxu0 0
    %791 = vmatpush.bf16.msra.mxu0 0
    %792 = vmatpush.bf16.msra.mxu0 0
    %793 = vmatpush.bf16.msra.mxu0 0
    %794 = vmatpush.bf16.msra.mxu0 %v782
    %795 = vmatpush.bf16.msra.mxu0 %v781
    %796 = vmatmul.bf16.gmra.mxu0 %v786
    %v797 = vpop.f32.mrf.mxu0
    %v798 = vadd.f32 %v771, %v797
    %v799 = vpop.f32.mrf.mxu0
    %v800 = vadd.f32 %v771, %v799
    %801 = vdwg.mxu0
    %v802 = vmul.f32 %v798, 0.25
    %v803 = vmul.f32 %v800, 0.25
    %s804 = scalar_lea.vmem %s7, 1
    %v805 = vld [vmem:[%s804] sm:$0x1]
    %v807 = vperm.slane %v805, 0
    %v809 = vpack.c.bf16 %v802, %v802
    %v810 = vpack.c.bf16 %v803, %v803
    %v811 = vpack.c.bf16 %v798, %v798
    %v812 = vpack.c.bf16 %v800, %v800
    %v814 = vunpack.c.l.b16 %v811
    %v815 = vpack.c.b16 %v814, %v814
    %816 = vrot.lane.b32.xlu0 %v815, 96
    %v817 = vpop.permute.xlu0 %816
    %v819 = vsel %vm179, %v809, 0
    %v822 = vsel %vm179, %v817, 0
    %824 = vmatpush.bf16.xpose.msra.mxu0 0
    %825 = vmatpush.bf16.xpose.msra.mxu0 0
    %826 = vmatpush.bf16.xpose.msra.mxu0 0
    %827 = vmatpush.bf16.xpose.msra.mxu0 0
    %828 = vmatpush.bf16.xpose.msra.mxu0 0
    %829 = vmatpush.bf16.xpose.msra.mxu0 0
    %830 = vmatpush.bf16.xpose.msra.mxu0 0
    %831 = vmatpush.bf16.xpose.msra.mxu0 %v822
    %832 = vmatmul.bf16.gmra.mxu0 %v819
    %v833 = vpop.f32.mrf.mxu0
    %v834 = vadd.f32 %v59, %v833
    %v835 = vpop.f32.mrf.mxu0
    %836 = vdwg.mxu0
    %v838 = vunpack.c.l.b16 %v812
    %v839 = vpack.c.b16 %v838, %v838
    %840 = vrot.lane.b32.xlu0 %v839, 96
    %v841 = vpop.permute.xlu0 %840
    %v843 = vsel %vm179, %v810, 0
    %v846 = vsel %vm179, %v841, 0
    %848 = vmatpush.bf16.xpose.msra.mxu0 0
    %849 = vmatpush.bf16.xpose.msra.mxu0 0
    %850 = vmatpush.bf16.xpose.msra.mxu0 0
    %851 = vmatpush.bf16.xpose.msra.mxu0 0
    %852 = vmatpush.bf16.xpose.msra.mxu0 0
    %853 = vmatpush.bf16.xpose.msra.mxu0 0
    %854 = vmatpush.bf16.xpose.msra.mxu0 0
    %855 = vmatpush.bf16.xpose.msra.mxu0 %v846
    %856 = vmatmul.bf16.gmra.mxu0 %v843
    %v857 = vpop.f32.mrf.mxu0
    %v858 = vadd.f32 %v60, %v857
    %v859 = vpop.f32.mrf.mxu0
    %860 = vdwg.mxu0
    %v861 = vsel %vm223, %v834, -inf
    %862 = vmax.xlane.f32.xlu0 %v861
    %v863 = vpop.xlane.xlu0 %862
    %v864 = vsel %vm223, %v858, -inf
    %865 = vmax.xlane.f32.xlu0 %v864
    %v866 = vpop.xlane.xlu0 %865
    %v867 = vsub.f32 %v834, %v863
    %v868 = vsub.f32 %v858, %v866
    %v869 = vmul.f32 %v867, 1.442695
    %v870 = vpow.pop %v869
    %v871 = vmul.f32 %v868, 1.442695
    %v872 = vpow.pop %v871
    %v873 = vsel %vm223, %v870, 0.0
    %874 = vadd.xlane.f32.xlu0 %v873
    %v875 = vpop.xlane.xlu0 %874
    %v876 = vsel %vm223, %v872, 0.0
    %877 = vadd.xlane.f32.xlu0 %v876
    %v878 = vpop.xlane.xlu0 %877
    %v879 = vrcp.pop %v875
    %v880 = vrcp.pop %v878
    %v881 = vmul.f32 %v870, %v879
    %v882 = vmul.f32 %v872, %v880
    %v883 = vpack.c.bf16 %v881, %v881
    %v884 = vpack.c.bf16 %v882, %v882
    %885 = vrot.lane.b32.xlu0 %v815, 64
    %v886 = vpop.permute.xlu0 %885
    %v888 = vsel %vm223, %v883, 0
    %v891 = vsel %vm253, %v886, 0
    %893 = vmatpush.bf16.msra.mxu0 0
    %894 = vmatpush.bf16.msra.mxu0 0
    %895 = vmatpush.bf16.msra.mxu0 0
    %896 = vmatpush.bf16.msra.mxu0 0
    %897 = vmatpush.bf16.msra.mxu0 0
    %898 = vmatpush.bf16.msra.mxu0 0
    %899 = vmatpush.bf16.msra.mxu0 0
    %900 = vmatpush.bf16.msra.mxu0 %v891
    %901 = vmatmul.bf16.gmra.mxu0 %v888
    %v902 = vpop.f32.mrf.mxu0
    %v903 = vadd.f32 0.0, %v902
    %v904 = vpop.f32.mrf.mxu0
    %905 = vdwg.mxu0
    %906 = vrot.lane.b32.xlu0 %v839, 64
    %v907 = vpop.permute.xlu0 %906
    %v909 = vsel %vm223, %v884, 0
    %v912 = vsel %vm253, %v907, 0
    %914 = vmatpush.bf16.msra.mxu0 0
    %915 = vmatpush.bf16.msra.mxu0 0
    %916 = vmatpush.bf16.msra.mxu0 0
    %917 = vmatpush.bf16.msra.mxu0 0
    %918 = vmatpush.bf16.msra.mxu0 0
    %919 = vmatpush.bf16.msra.mxu0 0
    %920 = vmatpush.bf16.msra.mxu0 0
    %921 = vmatpush.bf16.msra.mxu0 %v912
    %922 = vmatmul.bf16.gmra.mxu0 %v909
    %v923 = vpop.f32.mrf.mxu0
    %v924 = vadd.f32 0.0, %v923
    %v925 = vpop.f32.mrf.mxu0
    %926 = vdwg.mxu0
    %v927 = vpack.c.bf16 %v924, %v903
    %s928 = scalar_lea.vmem %s6, 16
    %v929 = vld [vmem:[%s928] sm:$0xf]
    %v930 = vld [vmem:[%s928 + $0x4] sm:$0xf]
    %v933 = vunpack.c.l.b16 %v929
    %v934 = vunpack.c.l.b16 %v930
    %v935 = vpack.c.b16 %v934, %v933
    %v938 = vsel %vm179, %v927, 0
    %940 = vmatpush.bf16.msra.mxu0 0
    %941 = vmatpush.bf16.msra.mxu0 0
    %942 = vmatpush.bf16.msra.mxu0 0
    %943 = vmatpush.bf16.msra.mxu0 0
    %944 = vmatpush.bf16.msra.mxu0 0
    %945 = vmatpush.bf16.msra.mxu0 0
    %946 = vmatpush.bf16.msra.mxu0 0
    %947 = vmatpush.bf16.msra.mxu0 %v935
    %948 = vmatmul.bf16.gmra.mxu0 %v938
    %v949 = vpop.f32.mrf.mxu0
    %v950 = vadd.f32 0.0, %v949
    %v951 = vpop.f32.mrf.mxu0
    %v952 = vadd.f32 0.0, %v951
    %953 = vdwg.mxu0
    %v954 = vadd.f32 %v807, %v950
    %v955 = vadd.f32 %v807, %v952
    %v957 = vunpack.c.l.b16 %v809
    %v958 = vpack.c.b16 %v957, %v957
    %959 = vrot.lane.b32.xlu0 %v958, 112
    %v960 = vpop.permute.xlu0 %959
    %961 = vrot.lane.b32.xlu0 %v815, 80
    %v962 = vpop.permute.xlu0 %961
    %v964 = vsel %vm179, %v960, 0
    %v967 = vsel %vm179, %v962, 0
    %969 = vmatpush.bf16.xpose.msra.mxu0 0
    %970 = vmatpush.bf16.xpose.msra.mxu0 0
    %971 = vmatpush.bf16.xpose.msra.mxu0 0
    %972 = vmatpush.bf16.xpose.msra.mxu0 0
    %973 = vmatpush.bf16.xpose.msra.mxu0 0
    %974 = vmatpush.bf16.xpose.msra.mxu0 0
    %975 = vmatpush.bf16.xpose.msra.mxu0 0
    %976 = vmatpush.bf16.xpose.msra.mxu0 %v967
    %977 = vmatmul.bf16.gmra.mxu0 %v964
    %v978 = vpop.f32.mrf.mxu0
    %v979 = vadd.f32 %v59, %v978
    %v980 = vpop.f32.mrf.mxu0
    %981 = vdwg.mxu0
    %v983 = vunpack.c.l.b16 %v810
    %v984 = vpack.c.b16 %v983, %v983
    %985 = vrot.lane.b32.xlu0 %v984, 112
    %v986 = vpop.permute.xlu0 %985
    %987 = vrot.lane.b32.xlu0 %v839, 80
    %v988 = vpop.permute.xlu0 %987
    %v990 = vsel %vm179, %v986, 0
    %v993 = vsel %vm179, %v988, 0
    %995 = vmatpush.bf16.xpose.msra.mxu0 0
    %996 = vmatpush.bf16.xpose.msra.mxu0 0
    %997 = vmatpush.bf16.xpose.msra.mxu0 0
    %998 = vmatpush.bf16.xpose.msra.mxu0 0
    %999 = vmatpush.bf16.xpose.msra.mxu0 0
    %1000 = vmatpush.bf16.xpose.msra.mxu0 0
    %1001 = vmatpush.bf16.xpose.msra.mxu0 0
    %1002 = vmatpush.bf16.xpose.msra.mxu0 %v993
    %1003 = vmatmul.bf16.gmra.mxu0 %v990
    %v1004 = vpop.f32.mrf.mxu0
    %v1005 = vadd.f32 %v60, %v1004
    %v1006 = vpop.f32.mrf.mxu0
    %1007 = vdwg.mxu0
    %v1008 = vsel %vm223, %v979, -inf
    %1009 = vmax.xlane.f32.xlu0 %v1008
    %v1010 = vpop.xlane.xlu0 %1009
    %v1011 = vsel %vm223, %v1005, -inf
    %1012 = vmax.xlane.f32.xlu0 %v1011
    %v1013 = vpop.xlane.xlu0 %1012
    %v1014 = vsub.f32 %v979, %v1010
    %v1015 = vsub.f32 %v1005, %v1013
    %v1016 = vmul.f32 %v1014, 1.442695
    %v1017 = vpow.pop %v1016
    %v1018 = vmul.f32 %v1015, 1.442695
    %v1019 = vpow.pop %v1018
    %v1020 = vsel %vm223, %v1017, 0.0
    %1021 = vadd.xlane.f32.xlu0 %v1020
    %v1022 = vpop.xlane.xlu0 %1021
    %v1023 = vsel %vm223, %v1019, 0.0
    %1024 = vadd.xlane.f32.xlu0 %v1023
    %v1025 = vpop.xlane.xlu0 %1024
    %v1026 = vrcp.pop %v1022
    %v1027 = vrcp.pop %v1025
    %v1028 = vmul.f32 %v1017, %v1026
    %v1029 = vmul.f32 %v1019, %v1027
    %v1030 = vpack.c.bf16 %v1028, %v1028
    %v1031 = vpack.c.bf16 %v1029, %v1029
    %1032 = vrot.lane.b32.xlu0 %v815, 48
    %v1033 = vpop.permute.xlu0 %1032
    %v1035 = vsel %vm223, %v1030, 0
    %v1038 = vsel %vm253, %v1033, 0
    %1040 = vmatpush.bf16.msra.mxu0 0
    %1041 = vmatpush.bf16.msra.mxu0 0
    %1042 = vmatpush.bf16.msra.mxu0 0
    %1043 = vmatpush.bf16.msra.mxu0 0
    %1044 = vmatpush.bf16.msra.mxu0 0
    %1045 = vmatpush.bf16.msra.mxu0 0
    %1046 = vmatpush.bf16.msra.mxu0 0
    %1047 = vmatpush.bf16.msra.mxu0 %v1038
    %1048 = vmatmul.bf16.gmra.mxu0 %v1035
    %v1049 = vpop.f32.mrf.mxu0
    %v1050 = vadd.f32 0.0, %v1049
    %v1051 = vpop.f32.mrf.mxu0
    %1052 = vdwg.mxu0
    %1053 = vrot.lane.b32.xlu0 %v839, 48
    %v1054 = vpop.permute.xlu0 %1053
    %v1056 = vsel %vm223, %v1031, 0
    %v1059 = vsel %vm253, %v1054, 0
    %1061 = vmatpush.bf16.msra.mxu0 0
    %1062 = vmatpush.bf16.msra.mxu0 0
    %1063 = vmatpush.bf16.msra.mxu0 0
    %1064 = vmatpush.bf16.msra.mxu0 0
    %1065 = vmatpush.bf16.msra.mxu0 0
    %1066 = vmatpush.bf16.msra.mxu0 0
    %1067 = vmatpush.bf16.msra.mxu0 0
    %1068 = vmatpush.bf16.msra.mxu0 %v1059
    %1069 = vmatmul.bf16.gmra.mxu0 %v1056
    %v1070 = vpop.f32.mrf.mxu0
    %v1071 = vadd.f32 0.0, %v1070
    %v1072 = vpop.f32.mrf.mxu0
    %1073 = vdwg.mxu0
    %v1074 = vpack.c.bf16 %v1071, %v1050
    %v1075 = vld [vmem:[%s928 + $0x8] sm:$0xf]
    %v1076 = vld [vmem:[%s928 + $0xc] sm:$0xf]
    %v1079 = vunpack.c.l.b16 %v1075
    %v1080 = vunpack.c.l.b16 %v1076
    %v1081 = vpack.c.b16 %v1080, %v1079
    %v1084 = vsel %vm179, %v1074, 0
    %1086 = vmatpush.bf16.msra.mxu0 0
    %1087 = vmatpush.bf16.msra.mxu0 0
    %1088 = vmatpush.bf16.msra.mxu0 0
    %1089 = vmatpush.bf16.msra.mxu0 0
    %1090 = vmatpush.bf16.msra.mxu0 0
    %1091 = vmatpush.bf16.msra.mxu0 0
    %1092 = vmatpush.bf16.msra.mxu0 0
    %1093 = vmatpush.bf16.msra.mxu0 %v1081
    %1094 = vmatmul.bf16.gmra.mxu0 %v1084
    %v1095 = vpop.f32.mrf.mxu0
    %v1096 = vadd.f32 0.0, %v1095
    %v1097 = vpop.f32.mrf.mxu0
    %v1098 = vadd.f32 0.0, %v1097
    %1099 = vdwg.mxu0
    %v1100 = vadd.f32 %v954, %v1096
    %v1101 = vadd.f32 %v955, %v1098
    %v1102 = vadd.f32 %v1100, %v760
    %v1103 = vadd.f32 %v1101, %v761
    %s1104 = scalar_lea.vmem %s8, 1
    %v1105 = vld [vmem:[%s1104] sm:$0x1]
    %s1106 = scalar_lea.vmem %s9, 1
    %v1107 = vld [vmem:[%s1106] sm:$0x1]
    %v1108 = vsel %vm67, %v1102, 0.0
    %1109 = vadd.xlane.f32.xlu0 %v1108
    %v1110 = vpop.xlane.xlu0 %1109
    %v1111 = vsel %vm67, %v1103, 0.0
    %1112 = vadd.xlane.f32.xlu0 %v1111
    %v1113 = vpop.xlane.xlu0 %1112
    %v1114 = vmul.f32 %v1102, %v1102
    %v1115 = vmul.f32 %v1103, %v1103
    %v1116 = vsel %vm67, %v1114, 0.0
    %1117 = vadd.xlane.f32.xlu0 %v1116
    %v1118 = vpop.xlane.xlu0 %1117
    %v1119 = vsel %vm67, %v1115, 0.0
    %1120 = vadd.xlane.f32.xlu0 %v1119
    %v1121 = vpop.xlane.xlu0 %1120
    %v1122 = vmul.f32 %v1110, 0.03125
    %v1123 = vmul.f32 %v1113, 0.03125
    %v1124 = vmul.f32 %v1118, 0.03125
    %v1125 = vmul.f32 %v1121, 0.03125
    %v1126 = vmul.f32 %v1122, %v1122
    %v1127 = vmul.f32 %v1123, %v1123
    %v1128 = vsub.f32 %v1124, %v1126
    %v1129 = vsub.f32 %v1125, %v1127
    %v1130 = vsub.f32 %v1102, %v1122
    %v1131 = vsub.f32 %v1103, %v1123
    %v1132 = vadd.f32 %v1128, 1e-12
    %v1133 = vadd.f32 %v1129, 1e-12
    %v1134 = vrsqrt.pop %v1132
    %v1135 = vmul.f32 %v1134, %v1132
    %v1136 = vmul.f32 %v1135, %v1134
    %v1137 = vmul.f32 0.5, %v1136
    %v1138 = vsub.f32 1.5, %v1137
    %v1139 = vmul.f32 %v1134, %v1138
    %vm1140 = vweird.f32 %v1132
    %vm1141 = vweird.f32 %v1134
    %vm1142 = vmor %vm1140, %vm1141
    %v1143 = vsel %vm1142, %v1134, %v1139
    %v1144 = vrsqrt.pop %v1133
    %v1145 = vmul.f32 %v1144, %v1133
    %v1146 = vmul.f32 %v1145, %v1144
    %v1147 = vmul.f32 0.5, %v1146
    %v1148 = vsub.f32 1.5, %v1147
    %v1149 = vmul.f32 %v1144, %v1148
    %vm1150 = vweird.f32 %v1133
    %vm1151 = vweird.f32 %v1144
    %vm1152 = vmor %vm1150, %vm1151
    %v1153 = vsel %vm1152, %v1144, %v1149
    %v1154 = vmul.f32 %v1130, %v1143
    %v1155 = vmul.f32 %v1131, %v1153
    %v1157 = vperm.slane %v1105, 0
    %v1159 = vmul.f32 %v1154, %v1157
    %v1160 = vmul.f32 %v1155, %v1157
    %v1162 = vperm.slane %v1107, 0
    %v1164 = vadd.f32 %v1159, %v1162
    %v1165 = vadd.f32 %v1160, %v1162
    %v1166 = vpack.c.bf16 %v1165, %v1164
    %s1167 = scalar_lea.vmem %s10, 16
    %v1168 = vld [vmem:[%s1167] sm:$0xf]
    %v1169 = vld [vmem:[%s1167 + $0x4] sm:$0xf]
    %v1170 = vld [vmem:[%s1167 + $0x8] sm:$0xf]
    %v1171 = vld [vmem:[%s1167 + $0xc] sm:$0xf]
    %s1172 = scalar_lea.vmem %s11, 1
    %v1173 = vld [vmem:[%s1172] sm:$0x1]
    %v1175 = vperm.slane %v1173, 0
    %v1181 = vunpack.c.l.b16 %v1168
    %v1182 = vunpack.c.l.b16 %v1169
    %v1183 = vunpack.c.l.b16 %v1170
    %v1184 = vunpack.c.l.b16 %v1171
    %v1185 = vpack.c.b16 %v1182, %v1181
    %v1186 = vpack.c.b16 %v1184, %v1183
    %v1190 = vsel %vm67, %v1166, 0
    %1192 = vmatpush.bf16.msra.mxu0 0
    %1193 = vmatpush.bf16.msra.mxu0 0
    %1194 = vmatpush.bf16.msra.mxu0 0
    %1195 = vmatpush.bf16.msra.mxu0 0
    %1196 = vmatpush.bf16.msra.mxu0 0
    %1197 = vmatpush.bf16.msra.mxu0 0
    %1198 = vmatpush.bf16.msra.mxu0 %v1186
    %1199 = vmatpush.bf16.msra.mxu0 %v1185
    %1200 = vmatmul.bf16.gmra.mxu0 %v1190
    %v1201 = vpop.f32.mrf.mxu0
    %v1202 = vadd.f32 %v1175, %v1201
    %v1203 = vpop.f32.mrf.mxu0
    %v1204 = vadd.f32 %v1175, %v1203
    %1205 = vdwg.mxu0
    %v1206 = vmul.f32 %v1202, 0.5
    %v1207 = vmul.f32 %v1204, 0.5
    %v1208 = vmul.f32 %v1202, 0.70710677
    %v1209 = vmul.f32 %v1204, 0.70710677
    %v1210 = vand.u32 2147483647, %v1208
    %v1211 = vand.u32 2147483647, %v1209
    %v1212 = vmul.f32 %v1210, 0.3275911
    %v1213 = vmul.f32 %v1211, 0.3275911
    %v1214 = vadd.f32 %v1212, 1.0
    %v1215 = vadd.f32 %v1213, 1.0
    %v1216 = vrcp.pop %v1214
    %v1217 = vmul.f32 %v1214, %v1216
    %v1218 = vsub.f32 1.0, %v1217
    %v1219 = vmul.f32 %v1216, %v1218
    %v1220 = vadd.f32 %v1216, %v1219
    %vm1221 = vweird.f32 %v1214
    %vm1222 = vweird.f32 %v1216
    %vm1223 = vmor %vm1221, %vm1222
    %v1224 = vsel %vm1223, %v1216, %v1220
    %v1225 = vand.u32 2147483647, %v1214
    %vm1226 = vcmp.eq.f32.partialorder %v1225, 8.507059e+37
    %v1227 = vand.u32 %v1214, 2147483648
    %v1228 = vor.u32 1.1754944e-38, %v1227
    %v1229 = vsel %vm1226, %v1228, %v1224
    %v1230 = vmul.f32 1.0, %v1229
    %v1231 = vrcp.pop %v1215
    %v1232 = vmul.f32 %v1215, %v1231
    %v1233 = vsub.f32 1.0, %v1232
    %v1234 = vmul.f32 %v1231, %v1233
    %v1235 = vadd.f32 %v1231, %v1234
    %vm1236 = vweird.f32 %v1215
    %vm1237 = vweird.f32 %v1231
    %vm1238 = vmor %vm1236, %vm1237
    %v1239 = vsel %vm1238, %v1231, %v1235
    %v1240 = vand.u32 2147483647, %v1215
    %vm1241 = vcmp.eq.f32.partialorder %v1240, 8.507059e+37
    %v1242 = vand.u32 %v1215, 2147483648
    %v1243 = vor.u32 1.1754944e-38, %v1242
    %v1244 = vsel %vm1241, %v1243, %v1239
    %v1245 = vmul.f32 1.0, %v1244
    %v1246 = vmul.f32 %v1230, 1.0614054
    %v1247 = vmul.f32 %v1245, 1.0614054
    %v1248 = vadd.f32 %v1246, -1.4531521
    %v1249 = vadd.f32 %v1247, -1.4531521
    %v1250 = vmul.f32 %v1248, %v1230
    %v1251 = vmul.f32 %v1249, %v1245
    %v1252 = vadd.f32 %v1250, 1.4214138
    %v1253 = vadd.f32 %v1251, 1.4214138
    %v1254 = vmul.f32 %v1252, %v1230
    %v1255 = vmul.f32 %v1253, %v1245
    %v1256 = vadd.f32 %v1254, -0.28449672
    %v1257 = vadd.f32 %v1255, -0.28449672
    %v1258 = vmul.f32 %v1256, %v1230
    %v1259 = vmul.f32 %v1257, %v1245
    %v1260 = vadd.f32 %v1258, 0.2548296
    %v1261 = vadd.f32 %v1259, 0.2548296
    %v1262 = vmul.f32 %v1260, %v1230
    %v1263 = vmul.f32 %v1261, %v1245
    %v1264 = vsub.f32 0.0, %v1210
    %v1265 = vsub.f32 0.0, %v1211
    %v1266 = vmul.f32 %v1264, %v1210
    %v1267 = vmul.f32 %v1265, %v1211
    %v1268 = vmul.f32 %v1266, 1.442695
    %v1269 = vpow.pop %v1268
    %v1270 = vmul.f32 %v1267, 1.442695
    %v1271 = vpow.pop %v1270
    %v1272 = vmul.f32 %v1262, %v1269
    %v1273 = vmul.f32 %v1263, %v1271
    %v1274 = vsub.f32 1.0, %v1272
    %v1275 = vsub.f32 1.0, %v1273
    %vm1276 = vcmp.ge.f32.partialorder %v1208, 0.0
    %vm1277 = vcmp.ge.f32.partialorder %v1209, 0.0
    %v1278 = vsub.f32 0.0, %v1274
    %v1279 = vsub.f32 0.0, %v1275
    %v1280 = vsel %vm1276, %v1274, %v1278
    %v1281 = vsel %vm1277, %v1275, %v1279
    %v1282 = vadd.f32 %v1280, 1.0
    %v1283 = vadd.f32 %v1281, 1.0
    %v1284 = vmul.f32 %v1206, %v1282
    %v1285 = vmul.f32 %v1207, %v1283
    %v1286 = vpack.c.bf16 %v1285, %v1284
    %s1287 = scalar_lea.vmem %s12, 32
    %v1288 = vld [vmem:[%s1287] sm:$0xf]
    %v1289 = vld [vmem:[%s1287 + $0x4] sm:$0xf]
    %v1290 = vld [vmem:[%s1287 + $0x8] sm:$0xf]
    %v1291 = vld [vmem:[%s1287 + $0xc] sm:$0xf]
    %v1292 = vld [vmem:[%s1287 + $0x10] sm:$0xf]
    %v1293 = vld [vmem:[%s1287 + $0x14] sm:$0xf]
    %v1294 = vld [vmem:[%s1287 + $0x18] sm:$0xf]
    %v1295 = vld [vmem:[%s1287 + $0x1c] sm:$0xf]
    %s1296 = scalar_lea.vmem %s13, 1
    %v1297 = vld [vmem:[%s1296] sm:$0x1]
    %v1299 = vperm.slane %v1297, 0
    %v1309 = vunpack.c.l.b16 %v1288
    %v1310 = vunpack.c.l.b16 %v1289
    %v1311 = vunpack.c.l.b16 %v1290
    %v1312 = vunpack.c.l.b16 %v1291
    %v1313 = vunpack.c.l.b16 %v1292
    %v1314 = vunpack.c.l.b16 %v1293
    %v1315 = vunpack.c.l.b16 %v1294
    %v1316 = vunpack.c.l.b16 %v1295
    %v1317 = vpack.c.b16 %v1310, %v1309
    %v1318 = vpack.c.b16 %v1312, %v1311
    %v1319 = vpack.c.b16 %v1314, %v1313
    %v1320 = vpack.c.b16 %v1316, %v1315
    %v1326 = vsel %vm682, %v1286, 0
    %1328 = vmatpush.bf16.msra.mxu0 0
    %1329 = vmatpush.bf16.msra.mxu0 0
    %1330 = vmatpush.bf16.msra.mxu0 0
    %1331 = vmatpush.bf16.msra.mxu0 0
    %1332 = vmatpush.bf16.msra.mxu0 %v1320
    %1333 = vmatpush.bf16.msra.mxu0 %v1319
    %1334 = vmatpush.bf16.msra.mxu0 %v1318
    %1335 = vmatpush.bf16.msra.mxu0 %v1317
    %1336 = vmatmul.bf16.gmra.mxu0 %v1326
    %v1337 = vpop.f32.mrf.mxu0
    %v1338 = vadd.f32 %v1299, %v1337
    %v1339 = vpop.f32.mrf.mxu0
    %v1340 = vadd.f32 %v1299, %v1339
    %1341 = vdwg.mxu0
    %v1342 = vadd.f32 %v1338, %v1164
    %v1343 = vadd.f32 %v1340, %v1165
    %s1344 = scalar_lea.vmem %s14, 1
    %v1345 = vld [vmem:[%s1344] sm:$0x1]
    %s1346 = scalar_lea.vmem %s15, 1
    %v1347 = vld [vmem:[%s1346] sm:$0x1]
    %v1348 = vsel %vm67, %v1342, 0.0
    %1349 = vadd.xlane.f32.xlu0 %v1348
    %v1350 = vpop.xlane.xlu0 %1349
    %v1351 = vsel %vm67, %v1343, 0.0
    %1352 = vadd.xlane.f32.xlu0 %v1351
    %v1353 = vpop.xlane.xlu0 %1352
    %v1354 = vmul.f32 %v1342, %v1342
    %v1355 = vmul.f32 %v1343, %v1343
    %v1356 = vsel %vm67, %v1354, 0.0
    %1357 = vadd.xlane.f32.xlu0 %v1356
    %v1358 = vpop.xlane.xlu0 %1357
    %v1359 = vsel %vm67, %v1355, 0.0
    %1360 = vadd.xlane.f32.xlu0 %v1359
    %v1361 = vpop.xlane.xlu0 %1360
    %v1362 = vmul.f32 %v1350, 0.03125
    %v1363 = vmul.f32 %v1353, 0.03125
    %v1364 = vmul.f32 %v1358, 0.03125
    %v1365 = vmul.f32 %v1361, 0.03125
    %v1366 = vmul.f32 %v1362, %v1362
    %v1367 = vmul.f32 %v1363, %v1363
    %v1368 = vsub.f32 %v1364, %v1366
    %v1369 = vsub.f32 %v1365, %v1367
    %v1370 = vsub.f32 %v1342, %v1362
    %v1371 = vsub.f32 %v1343, %v1363
    %v1372 = vadd.f32 %v1368, 1e-12
    %v1373 = vadd.f32 %v1369, 1e-12
    %v1374 = vrsqrt.pop %v1372
    %v1375 = vmul.f32 %v1374, %v1372
    %v1376 = vmul.f32 %v1375, %v1374
    %v1377 = vmul.f32 0.5, %v1376
    %v1378 = vsub.f32 1.5, %v1377
    %v1379 = vmul.f32 %v1374, %v1378
    %vm1380 = vweird.f32 %v1372
    %vm1381 = vweird.f32 %v1374
    %vm1382 = vmor %vm1380, %vm1381
    %v1383 = vsel %vm1382, %v1374, %v1379
    %v1384 = vrsqrt.pop %v1373
    %v1385 = vmul.f32 %v1384, %v1373
    %v1386 = vmul.f32 %v1385, %v1384
    %v1387 = vmul.f32 0.5, %v1386
    %v1388 = vsub.f32 1.5, %v1387
    %v1389 = vmul.f32 %v1384, %v1388
    %vm1390 = vweird.f32 %v1373
    %vm1391 = vweird.f32 %v1384
    %vm1392 = vmor %vm1390, %vm1391
    %v1393 = vsel %vm1392, %v1384, %v1389
    %v1394 = vmul.f32 %v1370, %v1383
    %v1395 = vmul.f32 %v1371, %v1393
    %v1397 = vperm.slane %v1345, 0
    %v1399 = vmul.f32 %v1394, %v1397
    %v1400 = vmul.f32 %v1395, %v1397
    %v1402 = vperm.slane %v1347, 0
    %v1404 = vadd.f32 %v1399, %v1402
    %v1405 = vadd.f32 %v1400, %v1402
    %vm1406 = vcmask 253952
    %1407 = vst.msk [vmem:[#allocation2] sm:$0x1] %vm1406, %v1404
    %1408 = vst.msk [vmem:[#allocation2 + $0x1] sm:$0x1] %vm1406, %v1405
    // Predicated region
    $region66: #{_lambda_.1} parent=1 // pred_check
      _
    $region67: #{_lambda_.1} parent=1 // pred_check_branch
      %1410 = sbr.rel (0) target = $region69
    $region68: #{_lambda_.1} parent=1 // pred_region
      %1412 = vsyncadd [#allocation3], 0
      %s1414 = sshll.u32 [#allocation2], 4
      %s1415 = int_to_ptr.vmem [resolvable:$true] %s1414
      %s1416 = sshll.u32 %s16, 4
      %s1417 = int_to_ptr.hbm [resolvable:$true] %s1416
      %1419 = dma.vmem_to_hbm [thread:$0]  %s1415, 32, %s1417, [#allocation3]
    $region69: #{_lambda_.1} parent=1 // pred_fallthru
      _
    // Predicated region
    $region70: #{_lambda_.1} parent=1 // pred_check
      _
    $region71: #{_lambda_.1} parent=1 // pred_check_branch
      %1421 = sbr.rel (0) target = $region73
    $region72: #{_lambda_.1} parent=1 // pred_region
      %1423 = dma.done [#allocation3], 32
    $region73: #{_lambda_.1} parent=1 // pred_fallthru
      _
    %1424 = vsyncpa [#allocation3], 1

</llo_original>
